<compile_context>
chip_gen: v7x
topology: tpu7x:2x2x1
jax: 0.10.0
libtpu: 0.0.40
codegen_flags: <defaults>
</compile_context>

<pallas_src>
import jax
import jax.numpy as jnp
from jax.experimental import pallas as pl
from jax.experimental.pallas import tpu as pltpu


# Canonical layer sizes of the PyTorch module.
_DIMS = [(784, 512), (512, 256), (256, 128), (128, 64), (64, 10)]
_N_PAD = 128   # 10 -> 128 so the final store is lane-dense (no masked vst)


def mlp_kernel(x_ref,
               w1_ref, b1_ref,
               w2_ref, b2_ref,
               w3_ref, b3_ref,
               w4_ref, b4_ref,
               w5_ref, b5_ref,
               out_ref):
    """(ReLU o Linear) x4 followed by a final Linear, fused in one kernel.

    Weights are pre-transposed to (in, out) and stored as bf16; activations
    enter as bf16 and are re-cast to bf16 before each MXU matmul, with f32
    accumulation.  Bias-add / ReLU stay in f32 (safe on v5e, negligible cost).
    """

    def linear(h, w_ref, b_ref, relu):
        y = jnp.dot(h.astype(jnp.bfloat16), w_ref[...],
                    preferred_element_type=jnp.float32)
        y = y + b_ref[...]          # (1, out) broadcasts over the batch tile
        if relu:
            y = jnp.maximum(y, 0.0)
        return y

    h = x_ref[...]                               # (tb, 784) bf16
    h = linear(h, w1_ref, b1_ref, relu=True)     # (tb, 512)
    h = linear(h, w2_ref, b2_ref, relu=True)     # (tb, 256)
    h = linear(h, w3_ref, b3_ref, relu=True)     # (tb, 128)
    h = linear(h, w4_ref, b4_ref, relu=True)     # (tb, 64)
    h = linear(h, w5_ref, b5_ref, relu=False)    # (tb, 128): 10 real + 118 zero
    out_ref[...] = h.astype(out_ref.dtype)


def init_params(key, dtype=jnp.float32):
    """PyTorch-style init: U(-1/sqrt(fan_in), 1/sqrt(fan_in)).
    Weights are stored already transposed as (in_features, out_features)."""
    params = []
    for (fan_in, fan_out) in _DIMS:
        key, kw, kb = jax.random.split(key, 3)
        bound = 1.0 / (fan_in ** 0.5)
        w = jax.random.uniform(kw, (fan_in, fan_out), dtype, -bound, bound)
        b = jax.random.uniform(kb, (1, fan_out), dtype, -bound, bound)
        params.append((w, b))
    return params


def prepare_params(params):
    """One-time weight preprocessing, hoisted out of the forward pass:
    bf16 weights, f32 biases, last layer padded 10 -> 128 along N."""
    (w1, b1), (w2, b2), (w3, b3), (w4, b4), (w5, b5) = params
    w5p = jnp.zeros((64, _N_PAD), jnp.bfloat16).at[:, :10].set(
        w5.astype(jnp.bfloat16))
    b5p = jnp.zeros((1, _N_PAD), jnp.float32).at[:, :10].set(
        b5.astype(jnp.float32))
    return (
        w1.astype(jnp.bfloat16), b1.astype(jnp.float32),
        w2.astype(jnp.bfloat16), b2.astype(jnp.float32),
        w3.astype(jnp.bfloat16), b3.astype(jnp.float32),
        w4.astype(jnp.bfloat16), b4.astype(jnp.float32),
        w5p, b5p,
    )


def _round_up(n, m):
    return ((n + m - 1) // m) * m


def _choose_tile_b(batch):
    """Batch tile: multiple of 16 (bf16 sublane packing).  Tiny batches take a
    single step; mid-size batches split into >=2 steps so v7x's two TensorCores
    both get work; very large batches cap at 1024 rows/step (amortizes the
    ~0.35 us/step overhead and the per-step MXU weight re-push, ~9 MiB VMEM)."""
    b = _round_up(batch, 16)
    if b <= 32:
        return b
    if b <= 2048:
        return _round_up((b + 1) // 2, 16)
    return 1024


@jax.jit
def model_forward(x, prepared):
    # torch: x.view(-1, 784); stream activations as bf16 (kernel rounds to
    # bf16 before the matmul anyway, so numerics are unchanged).
    x2d = x.reshape(-1, 784).astype(jnp.bfloat16)
    batch = x2d.shape[0]

    tile_b = _choose_tile_b(batch)
    padded_b = _round_up(batch, tile_b)
    if padded_b != batch:
        x2d = jnp.pad(x2d, ((0, padded_b - batch), (0, 0)))

    # Full-array blocks with a constant index_map: weights/biases stay
    # VMEM-resident across batch-grid steps (no per-step re-DMA).
    param_specs = [pl.BlockSpec(p.shape, lambda i: (0, 0)) for p in prepared]

    out_padded = pl.pallas_call(
        mlp_kernel,
        out_shape=jax.ShapeDtypeStruct((padded_b, _N_PAD), jnp.float32),
        grid=(padded_b // tile_b,),
        in_specs=[pl.BlockSpec((tile_b, 784), lambda i: (i, 0))] + param_specs,
        out_specs=pl.BlockSpec((tile_b, _N_PAD), lambda i: (i, 0)),
        compiler_params=pltpu.CompilerParams(
            dimension_semantics=("parallel",),
            vmem_limit_bytes=32 << 20,
        ),
    )(x2d, *prepared)

    return out_padded[:batch, :10]


def reference_forward(x, params):
    """Pure-JAX reference mirroring the kernel numerics (bf16 operands,
    f32 accumulation), for a tight correctness check."""
    h = x.reshape(-1, 784).astype(jnp.float32)
    for i, (w, b) in enumerate(params):
        h = jnp.dot(h.astype(jnp.bfloat16), w.astype(jnp.bfloat16),
                    preferred_element_type=jnp.float32) + b.astype(jnp.float32)
        if i < len(params) - 1:
            h = jnp.maximum(h, 0.0)
    return h


if __name__ == "__main__":
    key = jax.random.PRNGKey(0)
    k_params, k_x = jax.random.split(key)

    params = init_params(k_params)
    prepared = prepare_params(params)   # one-time, outside the jitted forward

    # Small MNIST-like batch: (B, C, H, W) = (8, 1, 28, 28) -> flattens to (8, 784).
    x = jax.random.normal(k_x, (8, 1, 28, 28), dtype=jnp.float32)

    logits = model_forward(x, prepared)
    logits = jax.block_until_ready(logits)

    ref = reference_forward(x, params)
    assert logits.shape == (8, 10), logits.shape
    max_diff = float(jnp.max(jnp.abs(logits - ref)))
    assert jnp.allclose(logits, ref, atol=2e-2, rtol=2e-2), (
        f"mismatch vs reference, max abs diff = {max_diff}")

    print("KERNEL_OK")
</pallas_src>

<mosaic_0001>
module attributes {stable_mosaic.version = 11 : i64} {
  func.func @mlp_kernel(%arg0: i32, %arg1: memref<16x784xbf16, #tpu.memory_space<vmem>>, %arg2: memref<784x512xbf16, #tpu.memory_space<vmem>>, %arg3: memref<1x512xf32, #tpu.memory_space<vmem>>, %arg4: memref<512x256xbf16, #tpu.memory_space<vmem>>, %arg5: memref<1x256xf32, #tpu.memory_space<vmem>>, %arg6: memref<256x128xbf16, #tpu.memory_space<vmem>>, %arg7: memref<1x128xf32, #tpu.memory_space<vmem>>, %arg8: memref<128x64xbf16, #tpu.memory_space<vmem>>, %arg9: memref<1x64xf32, #tpu.memory_space<vmem>>, %arg10: memref<64x128xbf16, #tpu.memory_space<vmem>>, %arg11: memref<1x128xf32, #tpu.memory_space<vmem>>, %arg12: memref<16x128xf32, #tpu.memory_space<vmem>>) attributes {dimension_semantics = [#tpu.dimension_semantics<parallel>], iteration_bounds = array<i64: 1>, scalar_prefetch = 0 : i64, scratch_operands = 0 : i64, tpu.core_type = #tpu.core_type<tc>, window_params = [{transform_indices = @transform_0, window_bounds = array<i64: 16, 784>}, {pipeline_mode = #tpu.pipeline_mode<synchronous>, transform_indices = @transform_1, window_bounds = array<i64: 784, 512>}, {pipeline_mode = #tpu.pipeline_mode<synchronous>, transform_indices = @transform_2, window_bounds = array<i64: 1, 512>}, {pipeline_mode = #tpu.pipeline_mode<synchronous>, transform_indices = @transform_3, window_bounds = array<i64: 512, 256>}, {pipeline_mode = #tpu.pipeline_mode<synchronous>, transform_indices = @transform_4, window_bounds = array<i64: 1, 256>}, {pipeline_mode = #tpu.pipeline_mode<synchronous>, transform_indices = @transform_5, window_bounds = array<i64: 256, 128>}, {pipeline_mode = #tpu.pipeline_mode<synchronous>, transform_indices = @transform_6, window_bounds = array<i64: 1, 128>}, {pipeline_mode = #tpu.pipeline_mode<synchronous>, transform_indices = @transform_7, window_bounds = array<i64: 128, 64>}, {pipeline_mode = #tpu.pipeline_mode<synchronous>, transform_indices = @transform_8, window_bounds = array<i64: 1, 64>}, {pipeline_mode = #tpu.pipeline_mode<synchronous>, transform_indices = @transform_9, window_bounds = array<i64: 64, 128>}, {pipeline_mode = #tpu.pipeline_mode<synchronous>, transform_indices = @transform_10, window_bounds = array<i64: 1, 128>}, {transform_indices = @transform_11, window_bounds = array<i64: 16, 128>}]} {
    %c0 = arith.constant 0 : index
    %c0_0 = arith.constant 0 : index
    %0 = vector.load %arg1[%c0, %c0_0] : memref<16x784xbf16, #tpu.memory_space<vmem>>, vector<16x784xbf16>
    %c0_1 = arith.constant 0 : index
    %c0_2 = arith.constant 0 : index
    %1 = vector.load %arg2[%c0_1, %c0_2] : memref<784x512xbf16, #tpu.memory_space<vmem>>, vector<784x512xbf16>
    %cst = arith.constant dense<0.000000e+00> : vector<16x512xf32>
    %2 = tpu.matmul %0, %1, %cst {dimension_numbers = #tpu.dot_dimension_numbers<[1], [0], [0], [1], [0, 0, 1, 1], [], []>} : vector<16x784xbf16>, vector<784x512xbf16>, vector<16x512xf32> -> vector<16x512xf32>
    %c0_3 = arith.constant 0 : index
    %c0_4 = arith.constant 0 : index
    %3 = vector.load %arg3[%c0_3, %c0_4] : memref<1x512xf32, #tpu.memory_space<vmem>>, vector<1x512xf32>
    %4 = vector.broadcast %3 : vector<1x512xf32> to vector<16x512xf32>
    %5 = arith.addf %2, %4 : vector<16x512xf32>
    %cst_5 = arith.constant 0.000000e+00 : f32
    %6 = vector.broadcast %cst_5 : f32 to vector<16x512xf32>
    %7 = arith.maximumf %5, %6 : vector<16x512xf32>
    %8 = arith.truncf %7 : vector<16x512xf32> to vector<16x512xbf16>
    %c0_6 = arith.constant 0 : index
    %c0_7 = arith.constant 0 : index
    %9 = vector.load %arg4[%c0_6, %c0_7] : memref<512x256xbf16, #tpu.memory_space<vmem>>, vector<512x256xbf16>
    %cst_8 = arith.constant dense<0.000000e+00> : vector<16x256xf32>
    %10 = tpu.matmul %8, %9, %cst_8 {dimension_numbers = #tpu.dot_dimension_numbers<[1], [0], [0], [1], [0, 0, 1, 1], [], []>} : vector<16x512xbf16>, vector<512x256xbf16>, vector<16x256xf32> -> vector<16x256xf32>
    %c0_9 = arith.constant 0 : index
    %c0_10 = arith.constant 0 : index
    %11 = vector.load %arg5[%c0_9, %c0_10] : memref<1x256xf32, #tpu.memory_space<vmem>>, vector<1x256xf32>
    %12 = vector.broadcast %11 : vector<1x256xf32> to vector<16x256xf32>
    %13 = arith.addf %10, %12 : vector<16x256xf32>
    %cst_11 = arith.constant 0.000000e+00 : f32
    %14 = vector.broadcast %cst_11 : f32 to vector<16x256xf32>
    %15 = arith.maximumf %13, %14 : vector<16x256xf32>
    %16 = arith.truncf %15 : vector<16x256xf32> to vector<16x256xbf16>
    %c0_12 = arith.constant 0 : index
    %c0_13 = arith.constant 0 : index
    %17 = vector.load %arg6[%c0_12, %c0_13] : memref<256x128xbf16, #tpu.memory_space<vmem>>, vector<256x128xbf16>
    %cst_14 = arith.constant dense<0.000000e+00> : vector<16x128xf32>
    %18 = tpu.matmul %16, %17, %cst_14 {dimension_numbers = #tpu.dot_dimension_numbers<[1], [0], [0], [1], [0, 0, 1, 1], [], []>} : vector<16x256xbf16>, vector<256x128xbf16>, vector<16x128xf32> -> vector<16x128xf32>
    %c0_15 = arith.constant 0 : index
    %c0_16 = arith.constant 0 : index
    %19 = vector.load %arg7[%c0_15, %c0_16] : memref<1x128xf32, #tpu.memory_space<vmem>>, vector<1x128xf32>
    %20 = vector.broadcast %19 : vector<1x128xf32> to vector<16x128xf32>
    %21 = arith.addf %18, %20 : vector<16x128xf32>
    %cst_17 = arith.constant 0.000000e+00 : f32
    %22 = vector.broadcast %cst_17 : f32 to vector<16x128xf32>
    %23 = arith.maximumf %21, %22 : vector<16x128xf32>
    %24 = arith.truncf %23 : vector<16x128xf32> to vector<16x128xbf16>
    %c0_18 = arith.constant 0 : index
    %c0_19 = arith.constant 0 : index
    %25 = vector.load %arg8[%c0_18, %c0_19] : memref<128x64xbf16, #tpu.memory_space<vmem>>, vector<128x64xbf16>
    %cst_20 = arith.constant dense<0.000000e+00> : vector<16x64xf32>
    %26 = tpu.matmul %24, %25, %cst_20 {dimension_numbers = #tpu.dot_dimension_numbers<[1], [0], [0], [1], [0, 0, 1, 1], [], []>} : vector<16x128xbf16>, vector<128x64xbf16>, vector<16x64xf32> -> vector<16x64xf32>
    %c0_21 = arith.constant 0 : index
    %c0_22 = arith.constant 0 : index
    %27 = vector.load %arg9[%c0_21, %c0_22] : memref<1x64xf32, #tpu.memory_space<vmem>>, vector<1x64xf32>
    %28 = vector.broadcast %27 : vector<1x64xf32> to vector<16x64xf32>
    %29 = arith.addf %26, %28 : vector<16x64xf32>
    %cst_23 = arith.constant 0.000000e+00 : f32
    %30 = vector.broadcast %cst_23 : f32 to vector<16x64xf32>
    %31 = arith.maximumf %29, %30 : vector<16x64xf32>
    %32 = arith.truncf %31 : vector<16x64xf32> to vector<16x64xbf16>
    %c0_24 = arith.constant 0 : index
    %c0_25 = arith.constant 0 : index
    %33 = vector.load %arg10[%c0_24, %c0_25] : memref<64x128xbf16, #tpu.memory_space<vmem>>, vector<64x128xbf16>
    %cst_26 = arith.constant dense<0.000000e+00> : vector<16x128xf32>
    %34 = tpu.matmul %32, %33, %cst_26 {dimension_numbers = #tpu.dot_dimension_numbers<[1], [0], [0], [1], [0, 0, 1, 1], [], []>} : vector<16x64xbf16>, vector<64x128xbf16>, vector<16x128xf32> -> vector<16x128xf32>
    %c0_27 = arith.constant 0 : index
    %c0_28 = arith.constant 0 : index
    %35 = vector.load %arg11[%c0_27, %c0_28] : memref<1x128xf32, #tpu.memory_space<vmem>>, vector<1x128xf32>
    %36 = vector.broadcast %35 : vector<1x128xf32> to vector<16x128xf32>
    %37 = arith.addf %34, %36 : vector<16x128xf32>
    %c0_29 = arith.constant 0 : index
    %c0_30 = arith.constant 0 : index
    %38 = vector.load %arg12[%c0_29, %c0_30] : memref<16x128xf32, #tpu.memory_space<vmem>>, vector<16x128xf32>
    tpu.vector_store %arg12[%c0_29, %c0_30], %37 {strides = array<i32>} : memref<16x128xf32, #tpu.memory_space<vmem>>, vector<16x128xf32>,
    return
  }
  func.func @transform_0(%arg0: i32) -> (i32, i32) {
    %c0_i32 = arith.constant 0 : i32
    %c0_i32_0 = arith.constant 0 : i32
    return %arg0, %c0_i32 : i32, i32
  }
  func.func @transform_1(%arg0: i32) -> (i32, i32) {
    %c0_i32 = arith.constant 0 : i32
    %c0_i32_0 = arith.constant 0 : i32
    %c0_i32_1 = arith.constant 0 : i32
    return %c0_i32, %c0_i32_0 : i32, i32
  }
  func.func @transform_2(%arg0: i32) -> (i32, i32) {
    %c0_i32 = arith.constant 0 : i32
    %c0_i32_0 = arith.constant 0 : i32
    %c0_i32_1 = arith.constant 0 : i32
    return %c0_i32, %c0_i32_0 : i32, i32
  }
  func.func @transform_3(%arg0: i32) -> (i32, i32) {
    %c0_i32 = arith.constant 0 : i32
    %c0_i32_0 = arith.constant 0 : i32
    %c0_i32_1 = arith.constant 0 : i32
    return %c0_i32, %c0_i32_0 : i32, i32
  }
  func.func @transform_4(%arg0: i32) -> (i32, i32) {
    %c0_i32 = arith.constant 0 : i32
    %c0_i32_0 = arith.constant 0 : i32
    %c0_i32_1 = arith.constant 0 : i32
    return %c0_i32, %c0_i32_0 : i32, i32
  }
  func.func @transform_5(%arg0: i32) -> (i32, i32) {
    %c0_i32 = arith.constant 0 : i32
    %c0_i32_0 = arith.constant 0 : i32
    %c0_i32_1 = arith.constant 0 : i32
    return %c0_i32, %c0_i32_0 : i32, i32
  }
  func.func @transform_6(%arg0: i32) -> (i32, i32) {
    %c0_i32 = arith.constant 0 : i32
    %c0_i32_0 = arith.constant 0 : i32
    %c0_i32_1 = arith.constant 0 : i32
    return %c0_i32, %c0_i32_0 : i32, i32
  }
  func.func @transform_7(%arg0: i32) -> (i32, i32) {
    %c0_i32 = arith.constant 0 : i32
    %c0_i32_0 = arith.constant 0 : i32
    %c0_i32_1 = arith.constant 0 : i32
    return %c0_i32, %c0_i32_0 : i32, i32
  }
  func.func @transform_8(%arg0: i32) -> (i32, i32) {
    %c0_i32 = arith.constant 0 : i32
    %c0_i32_0 = arith.constant 0 : i32
    %c0_i32_1 = arith.constant 0 : i32
    return %c0_i32, %c0_i32_0 : i32, i32
  }
  func.func @transform_9(%arg0: i32) -> (i32, i32) {
    %c0_i32 = arith.constant 0 : i32
    %c0_i32_0 = arith.constant 0 : i32
    %c0_i32_1 = arith.constant 0 : i32
    return %c0_i32, %c0_i32_0 : i32, i32
  }
  func.func @transform_10(%arg0: i32) -> (i32, i32) {
    %c0_i32 = arith.constant 0 : i32
    %c0_i32_0 = arith.constant 0 : i32
    %c0_i32_1 = arith.constant 0 : i32
    return %c0_i32, %c0_i32_0 : i32, i32
  }
  func.func @transform_11(%arg0: i32) -> (i32, i32) {
    %c0_i32 = arith.constant 0 : i32
    %c0_i32_0 = arith.constant 0 : i32
    return %arg0, %c0_i32 : i32, i32
  }
}

</mosaic_0001>

<llo_original>
// kernel: model_forward.1
$region0: #{model_forward.1}
  #allocation0 [shape = 'u32[]', space=smem, size = 0x4, offset = 0x4, fixed_abs, tag = 'smem constant byte address 0x4 - core index']
  #allocation1 [shape = 'u32[144,128]{1,0:T(1,128)}', space=vmem, size = 0x12000, scoped, tag = 'internal scratch']
  %s0 = inlined_call_operand.vmem [shape: bf16[16,784], index: 0, kind: input, shape index: {}]
  %s1 = inlined_call_operand.hbm [shape: bf16[784,512], index: 1, kind: input, shape index: {}]
  %s2 = inlined_call_operand.vmem [shape: f32[1,512], index: 2, kind: input, shape index: {}]
  %s3 = inlined_call_operand.vmem [shape: bf16[512,256], index: 3, kind: input, shape index: {}]
  %s4 = inlined_call_operand.vmem [shape: f32[1,256], index: 4, kind: input, shape index: {}]
  %s5 = inlined_call_operand.vmem [shape: bf16[256,128], index: 5, kind: input, shape index: {}]
  %s6 = inlined_call_operand.vmem [shape: f32[1,128], index: 6, kind: input, shape index: {}]
  %s7 = inlined_call_operand.vmem [shape: bf16[128,64], index: 7, kind: input, shape index: {}]
  %s8 = inlined_call_operand.hbm [shape: f32[1,64], index: 8, kind: input, shape index: {}]
  %s9 = inlined_call_operand.vmem [shape: bf16[64,128], index: 9, kind: input, shape index: {}]
  %s10 = inlined_call_operand.hbm [shape: f32[1,128], index: 10, kind: input, shape index: {}]
  %s11 = inlined_call_operand.vmem [shape: f32[16,128], index: 11, kind: output, shape index: {}]
  %s12 = sld [smem:[#allocation0]]
  $region66: #{model_forward.1} parent=0
    _
  %s14 = ssub.s32 1, %s12
  %s15 = scalar_select 0, %s14, %s12
  $region1: #{model_forward.1} parent=0
    #allocation2 [shape = 'u8[802816]{0}', space=vmem, size = 0xc4000, scoped, tag = 'input window, operand 1, single buffered']
    #allocation3 [shape = 's32[1]{0}', space=sflag, size = 0x4, scoped, tag = 'scoped memory for model_forward.1']
    #allocation4 [shape = 'u8[512]{0}', space=vmem, size = 0x400, scoped, tag = 'input window, operand 8, single buffered']
    #allocation5 [shape = 's32[1]{0}', space=sflag, size = 0x4, scoped, tag = 'scoped memory for model_forward.1']
    #allocation6 [shape = 'u8[512]{0}', space=vmem, size = 0x400, scoped, tag = 'input window, operand 10, single buffered']
    %16 = vsyncpa [#allocation3], 0
    %17 = vsyncpa [#allocation5], 0
    // Predicated region
    $region2: #{model_forward.1} parent=1 // pred_check
      _
    $region3: #{model_forward.1} parent=1 // pred_check_branch
      %19 = sbr.rel (0) target = $region5
    $region4: #{model_forward.1} parent=1 // pred_region
      _
    $region5: #{model_forward.1} parent=1 // pred_fallthru
      _
    // Predicated region
    $region6: #{model_forward.1} parent=1 // pred_check
      _
    $region7: #{model_forward.1} parent=1 // pred_check_branch
      %21 = sbr.rel (0) target = $region9
    $region8: #{model_forward.1} parent=1 // pred_region
      %s23 = ssub.s32 25088, 25088
      %24 = vsyncadd [#allocation3], %s23
      %s25 = sshll.u32 [#allocation2], 4
      %s26 = int_to_ptr.vmem [resolvable:$true] %s25
      %31 = dma.hbm_to_vmem [thread:$0]  %s1, 25088, %s26, [#allocation3], 256, 256, 16
    $region9: #{model_forward.1} parent=1 // pred_fallthru
      _
    // Predicated region
    $region10: #{model_forward.1} parent=1 // pred_check
      _
    $region11: #{model_forward.1} parent=1 // pred_check_branch
      %33 = sbr.rel (0) target = $region13
    $region12: #{model_forward.1} parent=1 // pred_region
      _
    $region13: #{model_forward.1} parent=1 // pred_fallthru
      _
    // Predicated region
    $region14: #{model_forward.1} parent=1 // pred_check
      _
    $region15: #{model_forward.1} parent=1 // pred_check_branch
      %35 = sbr.rel (0) target = $region17
    $region16: #{model_forward.1} parent=1 // pred_region
      _
    $region17: #{model_forward.1} parent=1 // pred_fallthru
      _
    // Predicated region
    $region18: #{model_forward.1} parent=1 // pred_check
      _
    $region19: #{model_forward.1} parent=1 // pred_check_branch
      %37 = sbr.rel (0) target = $region21
    $region20: #{model_forward.1} parent=1 // pred_region
      _
    $region21: #{model_forward.1} parent=1 // pred_fallthru
      _
    // Predicated region
    $region22: #{model_forward.1} parent=1 // pred_check
      _
    $region23: #{model_forward.1} parent=1 // pred_check_branch
      %39 = sbr.rel (0) target = $region25
    $region24: #{model_forward.1} parent=1 // pred_region
      _
    $region25: #{model_forward.1} parent=1 // pred_fallthru
      _
    // Predicated region
    $region26: #{model_forward.1} parent=1 // pred_check
      _
    $region27: #{model_forward.1} parent=1 // pred_check_branch
      %41 = sbr.rel (0) target = $region29
    $region28: #{model_forward.1} parent=1 // pred_region
      _
    $region29: #{model_forward.1} parent=1 // pred_fallthru
      _
    // Predicated region
    $region30: #{model_forward.1} parent=1 // pred_check
      _
    $region31: #{model_forward.1} parent=1 // pred_check_branch
      %43 = sbr.rel (0) target = $region33
    $region32: #{model_forward.1} parent=1 // pred_region
      _
    $region33: #{model_forward.1} parent=1 // pred_fallthru
      _
    // Predicated region
    $region34: #{model_forward.1} parent=1 // pred_check
      _
    $region35: #{model_forward.1} parent=1 // pred_check_branch
      %45 = sbr.rel (0) target = $region37
    $region36: #{model_forward.1} parent=1 // pred_region
      %s47 = ssub.s32 16, 16
      %48 = vsyncadd [#allocation5], %s47
      %s50 = sshll.u32 [#allocation4], 4
      %s51 = int_to_ptr.vmem [resolvable:$true] %s50
      %53 = dma.hbm_to_vmem [thread:$0]  %s8, 16, %s51, [#allocation5]
    $region37: #{model_forward.1} parent=1 // pred_fallthru
      _
    // Predicated region
    $region38: #{model_forward.1} parent=1 // pred_check
      _
    $region39: #{model_forward.1} parent=1 // pred_check_branch
      %55 = sbr.rel (0) target = $region41
    $region40: #{model_forward.1} parent=1 // pred_region
      _
    $region41: #{model_forward.1} parent=1 // pred_fallthru
      _
    // Predicated region
    $region42: #{model_forward.1} parent=1 // pred_check
      _
    $region43: #{model_forward.1} parent=1 // pred_check_branch
      %57 = sbr.rel (0) target = $region45
    $region44: #{model_forward.1} parent=1 // pred_region
      %s59 = ssub.s32 16, 16
      %60 = vsyncadd [#allocation5], %s59
      %s62 = sshll.u32 [#allocation6], 4
      %s63 = int_to_ptr.vmem [resolvable:$true] %s62
      %65 = dma.hbm_to_vmem [thread:$0]  %s10, 16, %s63, [#allocation5]
    $region45: #{model_forward.1} parent=1 // pred_fallthru
      _
    // Predicated region
    $region46: #{model_forward.1} parent=1 // pred_check
      _
    $region47: #{model_forward.1} parent=1 // pred_check_branch
      %67 = sbr.rel (0) target = $region49
    $region48: #{model_forward.1} parent=1 // pred_region
      %68 = dma.done [#allocation3], 25088
    $region49: #{model_forward.1} parent=1 // pred_fallthru
      _
    // Predicated region
    $region50: #{model_forward.1} parent=1 // pred_check
      _
    $region51: #{model_forward.1} parent=1 // pred_check_branch
      %70 = sbr.rel (0) target = $region53
    $region52: #{model_forward.1} parent=1 // pred_region
      %71 = dma.done [#allocation5], 16
    $region53: #{model_forward.1} parent=1 // pred_fallthru
      _
    // Predicated region
    $region54: #{model_forward.1} parent=1 // pred_check
      _
    $region55: #{model_forward.1} parent=1 // pred_check_branch
      %73 = sbr.rel (0) target = $region57
    $region56: #{model_forward.1} parent=1 // pred_region
      %74 = dma.done [#allocation5], 16
    $region57: #{model_forward.1} parent=1 // pred_fallthru
      _
    %v76 = vld [vmem:[%s0] sm:$0xff]
    %v77 = vld [vmem:[%s0 + $0x8] sm:$0xff]
    %v78 = vld [vmem:[%s0 + $0x10] sm:$0xff]
    %v79 = vld [vmem:[%s0 + $0x18] sm:$0xf]
    %v80 = vld [vmem:[%s0 + $0x1c] sm:$0xff]
    %v81 = vld [vmem:[%s0 + $0x24] sm:$0xff]
    %v82 = vld [vmem:[%s0 + $0x2c] sm:$0xff]
    %v83 = vld [vmem:[%s0 + $0x34] sm:$0xf]
    %v84 = vld [vmem:[#allocation2] sm:$0xff]
    %v85 = vld [vmem:[#allocation2 + $0x8] sm:$0xff]
    %v86 = vld [vmem:[#allocation2 + $0x10] sm:$0xff]
    %v87 = vld [vmem:[#allocation2 + $0x18] sm:$0xff]
    %v88 = vld [vmem:[#allocation2 + $0x20] sm:$0xff]
    %v89 = vld [vmem:[#allocation2 + $0x28] sm:$0xff]
    %v90 = vld [vmem:[#allocation2 + $0x30] sm:$0xff]
    %v91 = vld [vmem:[#allocation2 + $0x38] sm:$0xff]
    %v92 = vld [vmem:[#allocation2 + $0x40] sm:$0xff]
    %v93 = vld [vmem:[#allocation2 + $0x48] sm:$0xff]
    %v94 = vld [vmem:[#allocation2 + $0x50] sm:$0xff]
    %v95 = vld [vmem:[#allocation2 + $0x58] sm:$0xff]
    %v96 = vld [vmem:[#allocation2 + $0x60] sm:$0xff]
    %v97 = vld [vmem:[#allocation2 + $0x68] sm:$0xff]
    %v98 = vld [vmem:[#allocation2 + $0x70] sm:$0xff]
    %v99 = vld [vmem:[#allocation2 + $0x78] sm:$0xff]
    %v100 = vld [vmem:[#allocation2 + $0x80] sm:$0xff]
    %v101 = vld [vmem:[#allocation2 + $0x88] sm:$0xff]
    %v102 = vld [vmem:[#allocation2 + $0x90] sm:$0xff]
    %v103 = vld [vmem:[#allocation2 + $0x98] sm:$0xff]
    %v104 = vld [vmem:[#allocation2 + $0xa0] sm:$0xff]
    %v105 = vld [vmem:[#allocation2 + $0xa8] sm:$0xff]
    %v106 = vld [vmem:[#allocation2 + $0xb0] sm:$0xff]
    %v107 = vld [vmem:[#allocation2 + $0xb8] sm:$0xff]
    %v108 = vld [vmem:[#allocation2 + $0xc0] sm:$0xff]
    %v109 = vld [vmem:[#allocation2 + $0xc8] sm:$0xff]
    %v110 = vld [vmem:[#allocation2 + $0xd0] sm:$0xff]
    %v111 = vld [vmem:[#allocation2 + $0xd8] sm:$0xff]
    %v112 = vld [vmem:[#allocation2 + $0xe0] sm:$0xff]
    %v113 = vld [vmem:[#allocation2 + $0xe8] sm:$0xff]
    %v114 = vld [vmem:[#allocation2 + $0xf0] sm:$0xff]
    %v115 = vld [vmem:[#allocation2 + $0xf8] sm:$0xff]
    %v116 = vld [vmem:[#allocation2 + $0x100] sm:$0xff]
    %v117 = vld [vmem:[#allocation2 + $0x108] sm:$0xff]
    %v118 = vld [vmem:[#allocation2 + $0x110] sm:$0xff]
    %v119 = vld [vmem:[#allocation2 + $0x118] sm:$0xff]
    %v120 = vld [vmem:[#allocation2 + $0x120] sm:$0xff]
    %v121 = vld [vmem:[#allocation2 + $0x128] sm:$0xff]
    %v122 = vld [vmem:[#allocation2 + $0x130] sm:$0xff]
    %v123 = vld [vmem:[#allocation2 + $0x138] sm:$0xff]
    %v124 = vld [vmem:[#allocation2 + $0x140] sm:$0xff]
    %v125 = vld [vmem:[#allocation2 + $0x148] sm:$0xff]
    %v126 = vld [vmem:[#allocation2 + $0x150] sm:$0xff]
    %v127 = vld [vmem:[#allocation2 + $0x158] sm:$0xff]
    %v128 = vld [vmem:[#allocation2 + $0x160] sm:$0xff]
    %v129 = vld [vmem:[#allocation2 + $0x168] sm:$0xff]
    %v130 = vld [vmem:[#allocation2 + $0x170] sm:$0xff]
    %v131 = vld [vmem:[#allocation2 + $0x178] sm:$0xff]
    %v132 = vld [vmem:[#allocation2 + $0x180] sm:$0xff]
    %v133 = vld [vmem:[#allocation2 + $0x188] sm:$0xff]
    %v134 = vld [vmem:[#allocation2 + $0x190] sm:$0xff]
    %v135 = vld [vmem:[#allocation2 + $0x198] sm:$0xff]
    %v136 = vld [vmem:[#allocation2 + $0x1a0] sm:$0xff]
    %v137 = vld [vmem:[#allocation2 + $0x1a8] sm:$0xff]
    %v138 = vld [vmem:[#allocation2 + $0x1b0] sm:$0xff]
    %v139 = vld [vmem:[#allocation2 + $0x1b8] sm:$0xff]
    %v140 = vld [vmem:[#allocation2 + $0x1c0] sm:$0xff]
    %v141 = vld [vmem:[#allocation2 + $0x1c8] sm:$0xff]
    %v142 = vld [vmem:[#allocation2 + $0x1d0] sm:$0xff]
    %v143 = vld [vmem:[#allocation2 + $0x1d8] sm:$0xff]
    %v144 = vld [vmem:[#allocation2 + $0x1e0] sm:$0xff]
    %v145 = vld [vmem:[#allocation2 + $0x1e8] sm:$0xff]
    %v146 = vld [vmem:[#allocation2 + $0x1f0] sm:$0xff]
    %v147 = vld [vmem:[#allocation2 + $0x1f8] sm:$0xff]
    %v148 = vld [vmem:[#allocation2 + $0x200] sm:$0xff]
    %v149 = vld [vmem:[#allocation2 + $0x208] sm:$0xff]
    %v150 = vld [vmem:[#allocation2 + $0x210] sm:$0xff]
    %v151 = vld [vmem:[#allocation2 + $0x218] sm:$0xff]
    %v152 = vld [vmem:[#allocation2 + $0x220] sm:$0xff]
    %v153 = vld [vmem:[#allocation2 + $0x228] sm:$0xff]
    %v154 = vld [vmem:[#allocation2 + $0x230] sm:$0xff]
    %v155 = vld [vmem:[#allocation2 + $0x238] sm:$0xff]
    %v156 = vld [vmem:[#allocation2 + $0x240] sm:$0xff]
    %v157 = vld [vmem:[#allocation2 + $0x248] sm:$0xff]
    %v158 = vld [vmem:[#allocation2 + $0x250] sm:$0xff]
    %v159 = vld [vmem:[#allocation2 + $0x258] sm:$0xff]
    %v160 = vld [vmem:[#allocation2 + $0x260] sm:$0xff]
    %v161 = vld [vmem:[#allocation2 + $0x268] sm:$0xff]
    %v162 = vld [vmem:[#allocation2 + $0x270] sm:$0xff]
    %v163 = vld [vmem:[#allocation2 + $0x278] sm:$0xff]
    %v164 = vld [vmem:[#allocation2 + $0x280] sm:$0xff]
    %v165 = vld [vmem:[#allocation2 + $0x288] sm:$0xff]
    %v166 = vld [vmem:[#allocation2 + $0x290] sm:$0xff]
    %v167 = vld [vmem:[#allocation2 + $0x298] sm:$0xff]
    %v168 = vld [vmem:[#allocation2 + $0x2a0] sm:$0xff]
    %v169 = vld [vmem:[#allocation2 + $0x2a8] sm:$0xff]
    %v170 = vld [vmem:[#allocation2 + $0x2b0] sm:$0xff]
    %v171 = vld [vmem:[#allocation2 + $0x2b8] sm:$0xff]
    %v172 = vld [vmem:[#allocation2 + $0x2c0] sm:$0xff]
    %v173 = vld [vmem:[#allocation2 + $0x2c8] sm:$0xff]
    %v174 = vld [vmem:[#allocation2 + $0x2d0] sm:$0xff]
    %v175 = vld [vmem:[#allocation2 + $0x2d8] sm:$0xff]
    %v176 = vld [vmem:[#allocation2 + $0x2e0] sm:$0xff]
    %v177 = vld [vmem:[#allocation2 + $0x2e8] sm:$0xff]
    %v178 = vld [vmem:[#allocation2 + $0x2f0] sm:$0xff]
    %v179 = vld [vmem:[#allocation2 + $0x2f8] sm:$0xff]
    %v180 = vld [vmem:[#allocation2 + $0x300] sm:$0xff]
    %v181 = vld [vmem:[#allocation2 + $0x308] sm:$0xff]
    %v182 = vld [vmem:[#allocation2 + $0x310] sm:$0xff]
    %v183 = vld [vmem:[#allocation2 + $0x318] sm:$0xff]
    %v184 = vld [vmem:[#allocation2 + $0x320] sm:$0xff]
    %v185 = vld [vmem:[#allocation2 + $0x328] sm:$0xff]
    %v186 = vld [vmem:[#allocation2 + $0x330] sm:$0xff]
    %v187 = vld [vmem:[#allocation2 + $0x338] sm:$0xff]
    %v188 = vld [vmem:[#allocation2 + $0x340] sm:$0xff]
    %v189 = vld [vmem:[#allocation2 + $0x348] sm:$0xff]
    %v190 = vld [vmem:[#allocation2 + $0x350] sm:$0xff]
    %v191 = vld [vmem:[#allocation2 + $0x358] sm:$0xff]
    %v192 = vld [vmem:[#allocation2 + $0x360] sm:$0xff]
    %v193 = vld [vmem:[#allocation2 + $0x368] sm:$0xff]
    %v194 = vld [vmem:[#allocation2 + $0x370] sm:$0xff]
    %v195 = vld [vmem:[#allocation2 + $0x378] sm:$0xff]
    %v196 = vld [vmem:[#allocation2 + $0x380] sm:$0xff]
    %v197 = vld [vmem:[#allocation2 + $0x388] sm:$0xff]
    %v198 = vld [vmem:[#allocation2 + $0x390] sm:$0xff]
    %v199 = vld [vmem:[#allocation2 + $0x398] sm:$0xff]
    %v200 = vld [vmem:[#allocation2 + $0x3a0] sm:$0xff]
    %v201 = vld [vmem:[#allocation2 + $0x3a8] sm:$0xff]
    %v202 = vld [vmem:[#allocation2 + $0x3b0] sm:$0xff]
    %v203 = vld [vmem:[#allocation2 + $0x3b8] sm:$0xff]
    %v204 = vld [vmem:[#allocation2 + $0x3c0] sm:$0xff]
    %v205 = vld [vmem:[#allocation2 + $0x3c8] sm:$0xff]
    %v206 = vld [vmem:[#allocation2 + $0x3d0] sm:$0xff]
    %v207 = vld [vmem:[#allocation2 + $0x3d8] sm:$0xff]
    %v208 = vld [vmem:[#allocation2 + $0x3e0] sm:$0xff]
    %v209 = vld [vmem:[#allocation2 + $0x3e8] sm:$0xff]
    %v210 = vld [vmem:[#allocation2 + $0x3f0] sm:$0xff]
    %v211 = vld [vmem:[#allocation2 + $0x3f8] sm:$0xff]
    %v212 = vld [vmem:[#allocation2 + $0x400] sm:$0xff]
    %v213 = vld [vmem:[#allocation2 + $0x408] sm:$0xff]
    %v214 = vld [vmem:[#allocation2 + $0x410] sm:$0xff]
    %v215 = vld [vmem:[#allocation2 + $0x418] sm:$0xff]
    %v216 = vld [vmem:[#allocation2 + $0x420] sm:$0xff]
    %v217 = vld [vmem:[#allocation2 + $0x428] sm:$0xff]
    %v218 = vld [vmem:[#allocation2 + $0x430] sm:$0xff]
    %v219 = vld [vmem:[#allocation2 + $0x438] sm:$0xff]
    %v220 = vld [vmem:[#allocation2 + $0x440] sm:$0xff]
    %v221 = vld [vmem:[#allocation2 + $0x448] sm:$0xff]
    %v222 = vld [vmem:[#allocation2 + $0x450] sm:$0xff]
    %v223 = vld [vmem:[#allocation2 + $0x458] sm:$0xff]
    %v224 = vld [vmem:[#allocation2 + $0x460] sm:$0xff]
    %v225 = vld [vmem:[#allocation2 + $0x468] sm:$0xff]
    %v226 = vld [vmem:[#allocation2 + $0x470] sm:$0xff]
    %v227 = vld [vmem:[#allocation2 + $0x478] sm:$0xff]
    %v228 = vld [vmem:[#allocation2 + $0x480] sm:$0xff]
    %v229 = vld [vmem:[#allocation2 + $0x488] sm:$0xff]
    %v230 = vld [vmem:[#allocation2 + $0x490] sm:$0xff]
    %v231 = vld [vmem:[#allocation2 + $0x498] sm:$0xff]
    %v232 = vld [vmem:[#allocation2 + $0x4a0] sm:$0xff]
    %v233 = vld [vmem:[#allocation2 + $0x4a8] sm:$0xff]
    %v234 = vld [vmem:[#allocation2 + $0x4b0] sm:$0xff]
    %v235 = vld [vmem:[#allocation2 + $0x4b8] sm:$0xff]
    %v236 = vld [vmem:[#allocation2 + $0x4c0] sm:$0xff]
    %v237 = vld [vmem:[#allocation2 + $0x4c8] sm:$0xff]
    %v238 = vld [vmem:[#allocation2 + $0x4d0] sm:$0xff]
    %v239 = vld [vmem:[#allocation2 + $0x4d8] sm:$0xff]
    %v240 = vld [vmem:[#allocation2 + $0x4e0] sm:$0xff]
    %v241 = vld [vmem:[#allocation2 + $0x4e8] sm:$0xff]
    %v242 = vld [vmem:[#allocation2 + $0x4f0] sm:$0xff]
    %v243 = vld [vmem:[#allocation2 + $0x4f8] sm:$0xff]
    %v244 = vld [vmem:[#allocation2 + $0x500] sm:$0xff]
    %v245 = vld [vmem:[#allocation2 + $0x508] sm:$0xff]
    %v246 = vld [vmem:[#allocation2 + $0x510] sm:$0xff]
    %v247 = vld [vmem:[#allocation2 + $0x518] sm:$0xff]
    %v248 = vld [vmem:[#allocation2 + $0x520] sm:$0xff]
    %v249 = vld [vmem:[#allocation2 + $0x528] sm:$0xff]
    %v250 = vld [vmem:[#allocation2 + $0x530] sm:$0xff]
    %v251 = vld [vmem:[#allocation2 + $0x538] sm:$0xff]
    %v252 = vld [vmem:[#allocation2 + $0x540] sm:$0xff]
    %v253 = vld [vmem:[#allocation2 + $0x548] sm:$0xff]
    %v254 = vld [vmem:[#allocation2 + $0x550] sm:$0xff]
    %v255 = vld [vmem:[#allocation2 + $0x558] sm:$0xff]
    %v256 = vld [vmem:[#allocation2 + $0x560] sm:$0xff]
    %v257 = vld [vmem:[#allocation2 + $0x568] sm:$0xff]
    %v258 = vld [vmem:[#allocation2 + $0x570] sm:$0xff]
    %v259 = vld [vmem:[#allocation2 + $0x578] sm:$0xff]
    %v260 = vld [vmem:[#allocation2 + $0x580] sm:$0xff]
    %v261 = vld [vmem:[#allocation2 + $0x588] sm:$0xff]
    %v262 = vld [vmem:[#allocation2 + $0x590] sm:$0xff]
    %v263 = vld [vmem:[#allocation2 + $0x598] sm:$0xff]
    %v264 = vld [vmem:[#allocation2 + $0x5a0] sm:$0xff]
    %v265 = vld [vmem:[#allocation2 + $0x5a8] sm:$0xff]
    %v266 = vld [vmem:[#allocation2 + $0x5b0] sm:$0xff]
    %v267 = vld [vmem:[#allocation2 + $0x5b8] sm:$0xff]
    %v268 = vld [vmem:[#allocation2 + $0x5c0] sm:$0xff]
    %v269 = vld [vmem:[#allocation2 + $0x5c8] sm:$0xff]
    %v270 = vld [vmem:[#allocation2 + $0x5d0] sm:$0xff]
    %v271 = vld [vmem:[#allocation2 + $0x5d8] sm:$0xff]
    %v272 = vld [vmem:[#allocation2 + $0x5e0] sm:$0xff]
    %v273 = vld [vmem:[#allocation2 + $0x5e8] sm:$0xff]
    %v274 = vld [vmem:[#allocation2 + $0x5f0] sm:$0xff]
    %v275 = vld [vmem:[#allocation2 + $0x5f8] sm:$0xff]
    %v276 = vld [vmem:[#allocation2 + $0x600] sm:$0xff]
    %v277 = vld [vmem:[#allocation2 + $0x608] sm:$0xff]
    %v278 = vld [vmem:[#allocation2 + $0x610] sm:$0xff]
    %v279 = vld [vmem:[#allocation2 + $0x618] sm:$0xff]
    %v280 = vld [vmem:[%s2] sm:$0xf]
    %v282 = vlaneseq
    %v283 = vshrl.u32 %v282, 7
    %v284 = vsub.s32 0, %v283
    %v285 = vrot.slane %v280, %v284
    %v286 = vlaneseq
    %v287 = vshrl.u32 %v286, 7
    %v288 = vsub.s32 1, %v287
    %v289 = vrot.slane %v280, %v288
    %v290 = vlaneseq
    %v291 = vshrl.u32 %v290, 7
    %v292 = vsub.s32 2, %v291
    %v293 = vrot.slane %v280, %v292
    %v294 = vlaneseq
    %v295 = vshrl.u32 %v294, 7
    %v296 = vsub.s32 3, %v295
    %v297 = vrot.slane %v280, %v296
    %v310 = vunpack.c.l.b16 %v76
    %v311 = vunpack.c.h.b16 %v76
    %v312 = vunpack.c.l.b16 %v77
    %v313 = vunpack.c.h.b16 %v77
    %v314 = vunpack.c.l.b16 %v78
    %v315 = vunpack.c.h.b16 %v78
    %v316 = vunpack.c.l.b16 %v79
    %v317 = vunpack.c.l.b16 %v80
    %v318 = vunpack.c.h.b16 %v80
    %v319 = vunpack.c.l.b16 %v81
    %v320 = vunpack.c.h.b16 %v81
    %v321 = vunpack.c.l.b16 %v82
    %v322 = vunpack.c.h.b16 %v82
    %v323 = vunpack.c.l.b16 %v83
    %v324 = vpack.c.b16 %v317, %v310
    %v325 = vpack.c.b16 %v318, %v311
    %v326 = vpack.c.b16 %v319, %v312
    %v327 = vpack.c.b16 %v320, %v313
    %v328 = vpack.c.b16 %v321, %v314
    %v329 = vpack.c.b16 %v322, %v315
    %v330 = vpack.c.b16 %v323, %v316
    %v533 = vunpack.c.l.b16 %v84
    %v534 = vunpack.c.h.b16 %v84
    %v535 = vunpack.c.l.b16 %v85
    %v536 = vunpack.c.h.b16 %v85
    %v537 = vunpack.c.l.b16 %v86
    %v538 = vunpack.c.h.b16 %v86
    %v539 = vunpack.c.l.b16 %v87
    %v540 = vunpack.c.h.b16 %v87
    %v541 = vunpack.c.l.b16 %v88
    %v542 = vunpack.c.h.b16 %v88
    %v543 = vunpack.c.l.b16 %v89
    %v544 = vunpack.c.h.b16 %v89
    %v545 = vunpack.c.l.b16 %v90
    %v546 = vunpack.c.h.b16 %v90
    %v547 = vunpack.c.l.b16 %v91
    %v548 = vunpack.c.h.b16 %v91
    %v549 = vunpack.c.l.b16 %v92
    %v550 = vunpack.c.h.b16 %v92
    %v551 = vunpack.c.l.b16 %v93
    %v552 = vunpack.c.h.b16 %v93
    %v553 = vunpack.c.l.b16 %v94
    %v554 = vunpack.c.h.b16 %v94
    %v555 = vunpack.c.l.b16 %v95
    %v556 = vunpack.c.h.b16 %v95
    %v557 = vunpack.c.l.b16 %v96
    %v558 = vunpack.c.h.b16 %v96
    %v559 = vunpack.c.l.b16 %v97
    %v560 = vunpack.c.h.b16 %v97
    %v561 = vunpack.c.l.b16 %v98
    %v562 = vunpack.c.h.b16 %v98
    %v563 = vunpack.c.l.b16 %v99
    %v564 = vunpack.c.h.b16 %v99
    %v565 = vunpack.c.l.b16 %v100
    %v566 = vunpack.c.h.b16 %v100
    %v567 = vunpack.c.l.b16 %v101
    %v568 = vunpack.c.h.b16 %v101
    %v569 = vunpack.c.l.b16 %v102
    %v570 = vunpack.c.h.b16 %v102
    %v571 = vunpack.c.l.b16 %v103
    %v572 = vunpack.c.h.b16 %v103
    %v573 = vunpack.c.l.b16 %v104
    %v574 = vunpack.c.h.b16 %v104
    %v575 = vunpack.c.l.b16 %v105
    %v576 = vunpack.c.h.b16 %v105
    %v577 = vunpack.c.l.b16 %v106
    %v578 = vunpack.c.h.b16 %v106
    %v579 = vunpack.c.l.b16 %v107
    %v580 = vunpack.c.h.b16 %v107
    %v581 = vunpack.c.l.b16 %v108
    %v582 = vunpack.c.h.b16 %v108
    %v583 = vunpack.c.l.b16 %v109
    %v584 = vunpack.c.h.b16 %v109
    %v585 = vunpack.c.l.b16 %v110
    %v586 = vunpack.c.h.b16 %v110
    %v587 = vunpack.c.l.b16 %v111
    %v588 = vunpack.c.h.b16 %v111
    %v589 = vunpack.c.l.b16 %v112
    %v590 = vunpack.c.h.b16 %v112
    %v591 = vunpack.c.l.b16 %v113
    %v592 = vunpack.c.h.b16 %v113
    %v593 = vunpack.c.l.b16 %v114
    %v594 = vunpack.c.h.b16 %v114
    %v595 = vunpack.c.l.b16 %v115
    %v596 = vunpack.c.h.b16 %v115
    %v597 = vunpack.c.l.b16 %v116
    %v598 = vunpack.c.h.b16 %v116
    %v599 = vunpack.c.l.b16 %v117
    %v600 = vunpack.c.h.b16 %v117
    %v601 = vunpack.c.l.b16 %v118
    %v602 = vunpack.c.h.b16 %v118
    %v603 = vunpack.c.l.b16 %v119
    %v604 = vunpack.c.h.b16 %v119
    %v605 = vunpack.c.l.b16 %v120
    %v606 = vunpack.c.h.b16 %v120
    %v607 = vunpack.c.l.b16 %v121
    %v608 = vunpack.c.h.b16 %v121
    %v609 = vunpack.c.l.b16 %v122
    %v610 = vunpack.c.h.b16 %v122
    %v611 = vunpack.c.l.b16 %v123
    %v612 = vunpack.c.h.b16 %v123
    %v613 = vunpack.c.l.b16 %v124
    %v614 = vunpack.c.h.b16 %v124
    %v615 = vunpack.c.l.b16 %v125
    %v616 = vunpack.c.h.b16 %v125
    %v617 = vunpack.c.l.b16 %v126
    %v618 = vunpack.c.h.b16 %v126
    %v619 = vunpack.c.l.b16 %v127
    %v620 = vunpack.c.h.b16 %v127
    %v621 = vunpack.c.l.b16 %v128
    %v622 = vunpack.c.h.b16 %v128
    %v623 = vunpack.c.l.b16 %v129
    %v624 = vunpack.c.h.b16 %v129
    %v625 = vunpack.c.l.b16 %v130
    %v626 = vunpack.c.h.b16 %v130
    %v627 = vunpack.c.l.b16 %v131
    %v628 = vunpack.c.h.b16 %v131
    %v629 = vunpack.c.l.b16 %v132
    %v630 = vunpack.c.h.b16 %v132
    %v631 = vunpack.c.l.b16 %v133
    %v632 = vunpack.c.h.b16 %v133
    %v633 = vunpack.c.l.b16 %v134
    %v634 = vunpack.c.h.b16 %v134
    %v635 = vunpack.c.l.b16 %v135
    %v636 = vunpack.c.h.b16 %v135
    %v637 = vunpack.c.l.b16 %v136
    %v638 = vunpack.c.h.b16 %v136
    %v639 = vunpack.c.l.b16 %v137
    %v640 = vunpack.c.h.b16 %v137
    %v641 = vunpack.c.l.b16 %v138
    %v642 = vunpack.c.h.b16 %v138
    %v643 = vunpack.c.l.b16 %v139
    %v644 = vunpack.c.h.b16 %v139
    %v645 = vunpack.c.l.b16 %v140
    %v646 = vunpack.c.h.b16 %v140
    %v647 = vunpack.c.l.b16 %v141
    %v648 = vunpack.c.h.b16 %v141
    %v649 = vunpack.c.l.b16 %v142
    %v650 = vunpack.c.h.b16 %v142
    %v651 = vunpack.c.l.b16 %v143
    %v652 = vunpack.c.h.b16 %v143
    %v653 = vunpack.c.l.b16 %v144
    %v654 = vunpack.c.h.b16 %v144
    %v655 = vunpack.c.l.b16 %v145
    %v656 = vunpack.c.h.b16 %v145
    %v657 = vunpack.c.l.b16 %v146
    %v658 = vunpack.c.h.b16 %v146
    %v659 = vunpack.c.l.b16 %v147
    %v660 = vunpack.c.h.b16 %v147
    %v661 = vunpack.c.l.b16 %v148
    %v662 = vunpack.c.h.b16 %v148
    %v663 = vunpack.c.l.b16 %v149
    %v664 = vunpack.c.h.b16 %v149
    %v665 = vunpack.c.l.b16 %v150
    %v666 = vunpack.c.h.b16 %v150
    %v667 = vunpack.c.l.b16 %v151
    %v668 = vunpack.c.h.b16 %v151
    %v669 = vunpack.c.l.b16 %v152
    %v670 = vunpack.c.h.b16 %v152
    %v671 = vunpack.c.l.b16 %v153
    %v672 = vunpack.c.h.b16 %v153
    %v673 = vunpack.c.l.b16 %v154
    %v674 = vunpack.c.h.b16 %v154
    %v675 = vunpack.c.l.b16 %v155
    %v676 = vunpack.c.h.b16 %v155
    %v677 = vunpack.c.l.b16 %v156
    %v678 = vunpack.c.h.b16 %v156
    %v679 = vunpack.c.l.b16 %v157
    %v680 = vunpack.c.h.b16 %v157
    %v681 = vunpack.c.l.b16 %v158
    %v682 = vunpack.c.h.b16 %v158
    %v683 = vunpack.c.l.b16 %v159
    %v684 = vunpack.c.h.b16 %v159
    %v685 = vunpack.c.l.b16 %v160
    %v686 = vunpack.c.h.b16 %v160
    %v687 = vunpack.c.l.b16 %v161
    %v688 = vunpack.c.h.b16 %v161
    %v689 = vunpack.c.l.b16 %v162
    %v690 = vunpack.c.h.b16 %v162
    %v691 = vunpack.c.l.b16 %v163
    %v692 = vunpack.c.h.b16 %v163
    %v693 = vunpack.c.l.b16 %v164
    %v694 = vunpack.c.h.b16 %v164
    %v695 = vunpack.c.l.b16 %v165
    %v696 = vunpack.c.h.b16 %v165
    %v697 = vunpack.c.l.b16 %v166
    %v698 = vunpack.c.h.b16 %v166
    %v699 = vunpack.c.l.b16 %v167
    %v700 = vunpack.c.h.b16 %v167
    %v701 = vunpack.c.l.b16 %v168
    %v702 = vunpack.c.h.b16 %v168
    %v703 = vunpack.c.l.b16 %v169
    %v704 = vunpack.c.h.b16 %v169
    %v705 = vunpack.c.l.b16 %v170
    %v706 = vunpack.c.h.b16 %v170
    %v707 = vunpack.c.l.b16 %v171
    %v708 = vunpack.c.h.b16 %v171
    %v709 = vunpack.c.l.b16 %v172
    %v710 = vunpack.c.h.b16 %v172
    %v711 = vunpack.c.l.b16 %v173
    %v712 = vunpack.c.h.b16 %v173
    %v713 = vunpack.c.l.b16 %v174
    %v714 = vunpack.c.h.b16 %v174
    %v715 = vunpack.c.l.b16 %v175
    %v716 = vunpack.c.h.b16 %v175
    %v717 = vunpack.c.l.b16 %v176
    %v718 = vunpack.c.h.b16 %v176
    %v719 = vunpack.c.l.b16 %v177
    %v720 = vunpack.c.h.b16 %v177
    %v721 = vunpack.c.l.b16 %v178
    %v722 = vunpack.c.h.b16 %v178
    %v723 = vunpack.c.l.b16 %v179
    %v724 = vunpack.c.h.b16 %v179
    %v725 = vunpack.c.l.b16 %v180
    %v726 = vunpack.c.h.b16 %v180
    %v727 = vunpack.c.l.b16 %v181
    %v728 = vunpack.c.h.b16 %v181
    %v729 = vunpack.c.l.b16 %v182
    %v730 = vunpack.c.h.b16 %v182
    %v731 = vunpack.c.l.b16 %v183
    %v732 = vunpack.c.h.b16 %v183
    %v733 = vunpack.c.l.b16 %v184
    %v734 = vunpack.c.h.b16 %v184
    %v735 = vunpack.c.l.b16 %v185
    %v736 = vunpack.c.h.b16 %v185
    %v737 = vunpack.c.l.b16 %v186
    %v738 = vunpack.c.h.b16 %v186
    %v739 = vunpack.c.l.b16 %v187
    %v740 = vunpack.c.h.b16 %v187
    %v741 = vunpack.c.l.b16 %v188
    %v742 = vunpack.c.h.b16 %v188
    %v743 = vunpack.c.l.b16 %v189
    %v744 = vunpack.c.h.b16 %v189
    %v745 = vunpack.c.l.b16 %v190
    %v746 = vunpack.c.h.b16 %v190
    %v747 = vunpack.c.l.b16 %v191
    %v748 = vunpack.c.h.b16 %v191
    %v749 = vunpack.c.l.b16 %v192
    %v750 = vunpack.c.h.b16 %v192
    %v751 = vunpack.c.l.b16 %v193
    %v752 = vunpack.c.h.b16 %v193
    %v753 = vunpack.c.l.b16 %v194
    %v754 = vunpack.c.h.b16 %v194
    %v755 = vunpack.c.l.b16 %v195
    %v756 = vunpack.c.h.b16 %v195
    %v757 = vunpack.c.l.b16 %v196
    %v758 = vunpack.c.h.b16 %v196
    %v759 = vunpack.c.l.b16 %v197
    %v760 = vunpack.c.h.b16 %v197
    %v761 = vunpack.c.l.b16 %v198
    %v762 = vunpack.c.h.b16 %v198
    %v763 = vunpack.c.l.b16 %v199
    %v764 = vunpack.c.h.b16 %v199
    %v765 = vunpack.c.l.b16 %v200
    %v766 = vunpack.c.h.b16 %v200
    %v767 = vunpack.c.l.b16 %v201
    %v768 = vunpack.c.h.b16 %v201
    %v769 = vunpack.c.l.b16 %v202
    %v770 = vunpack.c.h.b16 %v202
    %v771 = vunpack.c.l.b16 %v203
    %v772 = vunpack.c.h.b16 %v203
    %v773 = vunpack.c.l.b16 %v204
    %v774 = vunpack.c.h.b16 %v204
    %v775 = vunpack.c.l.b16 %v205
    %v776 = vunpack.c.h.b16 %v205
    %v777 = vunpack.c.l.b16 %v206
    %v778 = vunpack.c.h.b16 %v206
    %v779 = vunpack.c.l.b16 %v207
    %v780 = vunpack.c.h.b16 %v207
    %v781 = vunpack.c.l.b16 %v208
    %v782 = vunpack.c.h.b16 %v208
    %v783 = vunpack.c.l.b16 %v209
    %v784 = vunpack.c.h.b16 %v209
    %v785 = vunpack.c.l.b16 %v210
    %v786 = vunpack.c.h.b16 %v210
    %v787 = vunpack.c.l.b16 %v211
    %v788 = vunpack.c.h.b16 %v211
    %v789 = vunpack.c.l.b16 %v212
    %v790 = vunpack.c.h.b16 %v212
    %v791 = vunpack.c.l.b16 %v213
    %v792 = vunpack.c.h.b16 %v213
    %v793 = vunpack.c.l.b16 %v214
    %v794 = vunpack.c.h.b16 %v214
    %v795 = vunpack.c.l.b16 %v215
    %v796 = vunpack.c.h.b16 %v215
    %v797 = vunpack.c.l.b16 %v216
    %v798 = vunpack.c.h.b16 %v216
    %v799 = vunpack.c.l.b16 %v217
    %v800 = vunpack.c.h.b16 %v217
    %v801 = vunpack.c.l.b16 %v218
    %v802 = vunpack.c.h.b16 %v218
    %v803 = vunpack.c.l.b16 %v219
    %v804 = vunpack.c.h.b16 %v219
    %v805 = vunpack.c.l.b16 %v220
    %v806 = vunpack.c.h.b16 %v220
    %v807 = vunpack.c.l.b16 %v221
    %v808 = vunpack.c.h.b16 %v221
    %v809 = vunpack.c.l.b16 %v222
    %v810 = vunpack.c.h.b16 %v222
    %v811 = vunpack.c.l.b16 %v223
    %v812 = vunpack.c.h.b16 %v223
    %v813 = vunpack.c.l.b16 %v224
    %v814 = vunpack.c.h.b16 %v224
    %v815 = vunpack.c.l.b16 %v225
    %v816 = vunpack.c.h.b16 %v225
    %v817 = vunpack.c.l.b16 %v226
    %v818 = vunpack.c.h.b16 %v226
    %v819 = vunpack.c.l.b16 %v227
    %v820 = vunpack.c.h.b16 %v227
    %v821 = vunpack.c.l.b16 %v228
    %v822 = vunpack.c.h.b16 %v228
    %v823 = vunpack.c.l.b16 %v229
    %v824 = vunpack.c.h.b16 %v229
    %v825 = vunpack.c.l.b16 %v230
    %v826 = vunpack.c.h.b16 %v230
    %v827 = vunpack.c.l.b16 %v231
    %v828 = vunpack.c.h.b16 %v231
    %v829 = vunpack.c.l.b16 %v232
    %v830 = vunpack.c.h.b16 %v232
    %v831 = vunpack.c.l.b16 %v233
    %v832 = vunpack.c.h.b16 %v233
    %v833 = vunpack.c.l.b16 %v234
    %v834 = vunpack.c.h.b16 %v234
    %v835 = vunpack.c.l.b16 %v235
    %v836 = vunpack.c.h.b16 %v235
    %v837 = vunpack.c.l.b16 %v236
    %v838 = vunpack.c.h.b16 %v236
    %v839 = vunpack.c.l.b16 %v237
    %v840 = vunpack.c.h.b16 %v237
    %v841 = vunpack.c.l.b16 %v238
    %v842 = vunpack.c.h.b16 %v238
    %v843 = vunpack.c.l.b16 %v239
    %v844 = vunpack.c.h.b16 %v239
    %v845 = vunpack.c.l.b16 %v240
    %v846 = vunpack.c.h.b16 %v240
    %v847 = vunpack.c.l.b16 %v241
    %v848 = vunpack.c.h.b16 %v241
    %v849 = vunpack.c.l.b16 %v242
    %v850 = vunpack.c.h.b16 %v242
    %v851 = vunpack.c.l.b16 %v243
    %v852 = vunpack.c.h.b16 %v243
    %v853 = vunpack.c.l.b16 %v244
    %v854 = vunpack.c.h.b16 %v244
    %v855 = vunpack.c.l.b16 %v245
    %v856 = vunpack.c.h.b16 %v245
    %v857 = vunpack.c.l.b16 %v246
    %v858 = vunpack.c.h.b16 %v246
    %v859 = vunpack.c.l.b16 %v247
    %v860 = vunpack.c.h.b16 %v247
    %v861 = vunpack.c.l.b16 %v248
    %v862 = vunpack.c.h.b16 %v248
    %v863 = vunpack.c.l.b16 %v249
    %v864 = vunpack.c.h.b16 %v249
    %v865 = vunpack.c.l.b16 %v250
    %v866 = vunpack.c.h.b16 %v250
    %v867 = vunpack.c.l.b16 %v251
    %v868 = vunpack.c.h.b16 %v251
    %v869 = vunpack.c.l.b16 %v252
    %v870 = vunpack.c.h.b16 %v252
    %v871 = vunpack.c.l.b16 %v253
    %v872 = vunpack.c.h.b16 %v253
    %v873 = vunpack.c.l.b16 %v254
    %v874 = vunpack.c.h.b16 %v254
    %v875 = vunpack.c.l.b16 %v255
    %v876 = vunpack.c.h.b16 %v255
    %v877 = vunpack.c.l.b16 %v256
    %v878 = vunpack.c.h.b16 %v256
    %v879 = vunpack.c.l.b16 %v257
    %v880 = vunpack.c.h.b16 %v257
    %v881 = vunpack.c.l.b16 %v258
    %v882 = vunpack.c.h.b16 %v258
    %v883 = vunpack.c.l.b16 %v259
    %v884 = vunpack.c.h.b16 %v259
    %v885 = vunpack.c.l.b16 %v260
    %v886 = vunpack.c.h.b16 %v260
    %v887 = vunpack.c.l.b16 %v261
    %v888 = vunpack.c.h.b16 %v261
    %v889 = vunpack.c.l.b16 %v262
    %v890 = vunpack.c.h.b16 %v262
    %v891 = vunpack.c.l.b16 %v263
    %v892 = vunpack.c.h.b16 %v263
    %v893 = vunpack.c.l.b16 %v264
    %v894 = vunpack.c.h.b16 %v264
    %v895 = vunpack.c.l.b16 %v265
    %v896 = vunpack.c.h.b16 %v265
    %v897 = vunpack.c.l.b16 %v266
    %v898 = vunpack.c.h.b16 %v266
    %v899 = vunpack.c.l.b16 %v267
    %v900 = vunpack.c.h.b16 %v267
    %v901 = vunpack.c.l.b16 %v268
    %v902 = vunpack.c.h.b16 %v268
    %v903 = vunpack.c.l.b16 %v269
    %v904 = vunpack.c.h.b16 %v269
    %v905 = vunpack.c.l.b16 %v270
    %v906 = vunpack.c.h.b16 %v270
    %v907 = vunpack.c.l.b16 %v271
    %v908 = vunpack.c.h.b16 %v271
    %v909 = vunpack.c.l.b16 %v272
    %v910 = vunpack.c.h.b16 %v272
    %v911 = vunpack.c.l.b16 %v273
    %v912 = vunpack.c.h.b16 %v273
    %v913 = vunpack.c.l.b16 %v274
    %v914 = vunpack.c.h.b16 %v274
    %v915 = vunpack.c.l.b16 %v275
    %v916 = vunpack.c.h.b16 %v275
    %v917 = vunpack.c.l.b16 %v276
    %v918 = vunpack.c.h.b16 %v276
    %v919 = vunpack.c.l.b16 %v277
    %v920 = vunpack.c.h.b16 %v277
    %v921 = vunpack.c.l.b16 %v278
    %v922 = vunpack.c.h.b16 %v278
    %v923 = vunpack.c.l.b16 %v279
    %v924 = vunpack.c.h.b16 %v279
    %v925 = vpack.c.b16 %v537, %v533
    %v926 = vpack.c.b16 %v538, %v534
    %v927 = vpack.c.b16 %v539, %v535
    %v928 = vpack.c.b16 %v540, %v536
    %v929 = vpack.c.b16 %v545, %v541
    %v930 = vpack.c.b16 %v546, %v542
    %v931 = vpack.c.b16 %v547, %v543
    %v932 = vpack.c.b16 %v548, %v544
    %v933 = vpack.c.b16 %v553, %v549
    %v934 = vpack.c.b16 %v554, %v550
    %v935 = vpack.c.b16 %v555, %v551
    %v936 = vpack.c.b16 %v556, %v552
    %v937 = vpack.c.b16 %v561, %v557
    %v938 = vpack.c.b16 %v562, %v558
    %v939 = vpack.c.b16 %v563, %v559
    %v940 = vpack.c.b16 %v564, %v560
    %v941 = vpack.c.b16 %v569, %v565
    %v942 = vpack.c.b16 %v570, %v566
    %v943 = vpack.c.b16 %v571, %v567
    %v944 = vpack.c.b16 %v572, %v568
    %v945 = vpack.c.b16 %v577, %v573
    %v946 = vpack.c.b16 %v578, %v574
    %v947 = vpack.c.b16 %v579, %v575
    %v948 = vpack.c.b16 %v580, %v576
    %v949 = vpack.c.b16 %v585, %v581
    %v950 = vpack.c.b16 %v586, %v582
    %v951 = vpack.c.b16 %v587, %v583
    %v952 = vpack.c.b16 %v588, %v584
    %v953 = vpack.c.b16 %v593, %v589
    %v954 = vpack.c.b16 %v594, %v590
    %v955 = vpack.c.b16 %v595, %v591
    %v956 = vpack.c.b16 %v596, %v592
    %v957 = vpack.c.b16 %v601, %v597
    %v958 = vpack.c.b16 %v602, %v598
    %v959 = vpack.c.b16 %v603, %v599
    %v960 = vpack.c.b16 %v604, %v600
    %v961 = vpack.c.b16 %v609, %v605
    %v962 = vpack.c.b16 %v610, %v606
    %v963 = vpack.c.b16 %v611, %v607
    %v964 = vpack.c.b16 %v612, %v608
    %v965 = vpack.c.b16 %v617, %v613
    %v966 = vpack.c.b16 %v618, %v614
    %v967 = vpack.c.b16 %v619, %v615
    %v968 = vpack.c.b16 %v620, %v616
    %v969 = vpack.c.b16 %v625, %v621
    %v970 = vpack.c.b16 %v626, %v622
    %v971 = vpack.c.b16 %v627, %v623
    %v972 = vpack.c.b16 %v628, %v624
    %v973 = vpack.c.b16 %v633, %v629
    %v974 = vpack.c.b16 %v634, %v630
    %v975 = vpack.c.b16 %v635, %v631
    %v976 = vpack.c.b16 %v636, %v632
    %v977 = vpack.c.b16 %v641, %v637
    %v978 = vpack.c.b16 %v642, %v638
    %v979 = vpack.c.b16 %v643, %v639
    %v980 = vpack.c.b16 %v644, %v640
    %v981 = vpack.c.b16 %v649, %v645
    %v982 = vpack.c.b16 %v650, %v646
    %v983 = vpack.c.b16 %v651, %v647
    %v984 = vpack.c.b16 %v652, %v648
    %v985 = vpack.c.b16 %v657, %v653
    %v986 = vpack.c.b16 %v658, %v654
    %v987 = vpack.c.b16 %v659, %v655
    %v988 = vpack.c.b16 %v660, %v656
    %v989 = vpack.c.b16 %v665, %v661
    %v990 = vpack.c.b16 %v666, %v662
    %v991 = vpack.c.b16 %v667, %v663
    %v992 = vpack.c.b16 %v668, %v664
    %v993 = vpack.c.b16 %v673, %v669
    %v994 = vpack.c.b16 %v674, %v670
    %v995 = vpack.c.b16 %v675, %v671
    %v996 = vpack.c.b16 %v676, %v672
    %v997 = vpack.c.b16 %v681, %v677
    %v998 = vpack.c.b16 %v682, %v678
    %v999 = vpack.c.b16 %v683, %v679
    %v1000 = vpack.c.b16 %v684, %v680
    %v1001 = vpack.c.b16 %v689, %v685
    %v1002 = vpack.c.b16 %v690, %v686
    %v1003 = vpack.c.b16 %v691, %v687
    %v1004 = vpack.c.b16 %v692, %v688
    %v1005 = vpack.c.b16 %v697, %v693
    %v1006 = vpack.c.b16 %v698, %v694
    %v1007 = vpack.c.b16 %v699, %v695
    %v1008 = vpack.c.b16 %v700, %v696
    %v1009 = vpack.c.b16 %v705, %v701
    %v1010 = vpack.c.b16 %v706, %v702
    %v1011 = vpack.c.b16 %v707, %v703
    %v1012 = vpack.c.b16 %v708, %v704
    %v1013 = vpack.c.b16 %v713, %v709
    %v1014 = vpack.c.b16 %v714, %v710
    %v1015 = vpack.c.b16 %v715, %v711
    %v1016 = vpack.c.b16 %v716, %v712
    %v1017 = vpack.c.b16 %v721, %v717
    %v1018 = vpack.c.b16 %v722, %v718
    %v1019 = vpack.c.b16 %v723, %v719
    %v1020 = vpack.c.b16 %v724, %v720
    %v1021 = vpack.c.b16 %v729, %v725
    %v1022 = vpack.c.b16 %v730, %v726
    %v1023 = vpack.c.b16 %v731, %v727
    %v1024 = vpack.c.b16 %v732, %v728
    %v1025 = vpack.c.b16 %v737, %v733
    %v1026 = vpack.c.b16 %v738, %v734
    %v1027 = vpack.c.b16 %v739, %v735
    %v1028 = vpack.c.b16 %v740, %v736
    %v1029 = vpack.c.b16 %v745, %v741
    %v1030 = vpack.c.b16 %v746, %v742
    %v1031 = vpack.c.b16 %v747, %v743
    %v1032 = vpack.c.b16 %v748, %v744
    %v1033 = vpack.c.b16 %v753, %v749
    %v1034 = vpack.c.b16 %v754, %v750
    %v1035 = vpack.c.b16 %v755, %v751
    %v1036 = vpack.c.b16 %v756, %v752
    %v1037 = vpack.c.b16 %v761, %v757
    %v1038 = vpack.c.b16 %v762, %v758
    %v1039 = vpack.c.b16 %v763, %v759
    %v1040 = vpack.c.b16 %v764, %v760
    %v1041 = vpack.c.b16 %v769, %v765
    %v1042 = vpack.c.b16 %v770, %v766
    %v1043 = vpack.c.b16 %v771, %v767
    %v1044 = vpack.c.b16 %v772, %v768
    %v1045 = vpack.c.b16 %v777, %v773
    %v1046 = vpack.c.b16 %v778, %v774
    %v1047 = vpack.c.b16 %v779, %v775
    %v1048 = vpack.c.b16 %v780, %v776
    %v1049 = vpack.c.b16 %v785, %v781
    %v1050 = vpack.c.b16 %v786, %v782
    %v1051 = vpack.c.b16 %v787, %v783
    %v1052 = vpack.c.b16 %v788, %v784
    %v1053 = vpack.c.b16 %v793, %v789
    %v1054 = vpack.c.b16 %v794, %v790
    %v1055 = vpack.c.b16 %v795, %v791
    %v1056 = vpack.c.b16 %v796, %v792
    %v1057 = vpack.c.b16 %v801, %v797
    %v1058 = vpack.c.b16 %v802, %v798
    %v1059 = vpack.c.b16 %v803, %v799
    %v1060 = vpack.c.b16 %v804, %v800
    %v1061 = vpack.c.b16 %v809, %v805
    %v1062 = vpack.c.b16 %v810, %v806
    %v1063 = vpack.c.b16 %v811, %v807
    %v1064 = vpack.c.b16 %v812, %v808
    %v1065 = vpack.c.b16 %v817, %v813
    %v1066 = vpack.c.b16 %v818, %v814
    %v1067 = vpack.c.b16 %v819, %v815
    %v1068 = vpack.c.b16 %v820, %v816
    %v1069 = vpack.c.b16 %v825, %v821
    %v1070 = vpack.c.b16 %v826, %v822
    %v1071 = vpack.c.b16 %v827, %v823
    %v1072 = vpack.c.b16 %v828, %v824
    %v1073 = vpack.c.b16 %v833, %v829
    %v1074 = vpack.c.b16 %v834, %v830
    %v1075 = vpack.c.b16 %v835, %v831
    %v1076 = vpack.c.b16 %v836, %v832
    %v1077 = vpack.c.b16 %v841, %v837
    %v1078 = vpack.c.b16 %v842, %v838
    %v1079 = vpack.c.b16 %v843, %v839
    %v1080 = vpack.c.b16 %v844, %v840
    %v1081 = vpack.c.b16 %v849, %v845
    %v1082 = vpack.c.b16 %v850, %v846
    %v1083 = vpack.c.b16 %v851, %v847
    %v1084 = vpack.c.b16 %v852, %v848
    %v1085 = vpack.c.b16 %v857, %v853
    %v1086 = vpack.c.b16 %v858, %v854
    %v1087 = vpack.c.b16 %v859, %v855
    %v1088 = vpack.c.b16 %v860, %v856
    %v1089 = vpack.c.b16 %v865, %v861
    %v1090 = vpack.c.b16 %v866, %v862
    %v1091 = vpack.c.b16 %v867, %v863
    %v1092 = vpack.c.b16 %v868, %v864
    %v1093 = vpack.c.b16 %v873, %v869
    %v1094 = vpack.c.b16 %v874, %v870
    %v1095 = vpack.c.b16 %v875, %v871
    %v1096 = vpack.c.b16 %v876, %v872
    %v1097 = vpack.c.b16 %v881, %v877
    %v1098 = vpack.c.b16 %v882, %v878
    %v1099 = vpack.c.b16 %v883, %v879
    %v1100 = vpack.c.b16 %v884, %v880
    %v1101 = vpack.c.b16 %v889, %v885
    %v1102 = vpack.c.b16 %v890, %v886
    %v1103 = vpack.c.b16 %v891, %v887
    %v1104 = vpack.c.b16 %v892, %v888
    %v1105 = vpack.c.b16 %v897, %v893
    %v1106 = vpack.c.b16 %v898, %v894
    %v1107 = vpack.c.b16 %v899, %v895
    %v1108 = vpack.c.b16 %v900, %v896
    %v1109 = vpack.c.b16 %v905, %v901
    %v1110 = vpack.c.b16 %v906, %v902
    %v1111 = vpack.c.b16 %v907, %v903
    %v1112 = vpack.c.b16 %v908, %v904
    %v1113 = vpack.c.b16 %v913, %v909
    %v1114 = vpack.c.b16 %v914, %v910
    %v1115 = vpack.c.b16 %v915, %v911
    %v1116 = vpack.c.b16 %v916, %v912
    %v1117 = vpack.c.b16 %v921, %v917
    %v1118 = vpack.c.b16 %v922, %v918
    %v1119 = vpack.c.b16 %v923, %v919
    %v1120 = vpack.c.b16 %v924, %v920
    %vm1317 = vcmask 130048
    %v1319 = vsel %vm1317, %v330, 0
    %1321 = vmatprep.subr.bf16.mxu0 %v926
    %1322 = vmatpush1.bf16.msra.mxu0 %v925
    %1323 = vmatprep.subr.bf16.mxu0 %v930
    %1324 = vmatpush1.bf16.msra.mxu0 %v929
    %1325 = vmatprep.subr.bf16.mxu0 %v934
    %1326 = vmatpush1.bf16.msra.mxu0 %v933
    %1327 = vmatprep.subr.bf16.mxu0 %v938
    %1328 = vmatpush1.bf16.msra.mxu0 %v937
    %1329 = vmatprep.subr.bf16.mxu0 %v942
    %1330 = vmatpush1.bf16.msra.mxu0 %v941
    %1331 = vmatprep.subr.bf16.mxu0 %v946
    %1332 = vmatpush1.bf16.msra.mxu0 %v945
    %1333 = vmatprep.subr.bf16.mxu0 %v950
    %1334 = vmatpush1.bf16.msra.mxu0 %v949
    %1335 = vmatprep.subr.bf16.mxu0 %v954
    %1336 = vmatpush1.bf16.msra.mxu0 %v953
    %1337 = vmatprep.subr.bf16.mxu0 %v958
    %1338 = vmatpush1.bf16.msra.mxu0 %v957
    %1339 = vmatprep.subr.bf16.mxu0 %v962
    %1340 = vmatpush1.bf16.msra.mxu0 %v961
    %1341 = vmatprep.subr.bf16.mxu0 %v966
    %1342 = vmatpush1.bf16.msra.mxu0 %v965
    %1343 = vmatprep.subr.bf16.mxu0 %v970
    %1344 = vmatpush1.bf16.msra.mxu0 %v969
    %1345 = vmatprep.subr.bf16.mxu0 %v974
    %1346 = vmatpush1.bf16.msra.mxu0 %v973
    %1347 = vmatprep.subr.bf16.mxu0 %v978
    %1348 = vmatpush1.bf16.msra.mxu0 %v977
    %1349 = vmatprep.subr.bf16.mxu0 %v982
    %1350 = vmatpush1.bf16.msra.mxu0 %v981
    %1351 = vmatprep.subr.bf16.mxu0 %v986
    %1352 = vmatpush1.bf16.msra.mxu0 %v985
    %1353 = vmatprep.mubr.bf16.mxu0 %v325
    %1354 = vmatmul.mubr.bf16.gmra.mrb[0].mxu0 %v324
    %v1355 = vpop.f32.mrb[0].mxu0
    %v1356 = vadd.f32 %v285, %v1355
    %v1357 = vpop.f32.mrb[0].mxu0
    %v1358 = vadd.f32 %v289, %v1357
    %v1359 = vpop.f32.mrb[0].mxu0
    %v1360 = vadd.f32 %v285, %v1359
    %v1361 = vpop.f32.mrb[0].mxu0
    %v1362 = vadd.f32 %v289, %v1361
    %1363 = vdwg.mxu0
    %1364 = vmatprep.subr.bf16.mxu0 %v990
    %1365 = vmatpush1.bf16.msra.mxu0 %v989
    %1366 = vmatprep.subr.bf16.mxu0 %v994
    %1367 = vmatpush1.bf16.msra.mxu0 %v993
    %1368 = vmatprep.subr.bf16.mxu0 %v998
    %1369 = vmatpush1.bf16.msra.mxu0 %v997
    %1370 = vmatprep.subr.bf16.mxu0 %v1002
    %1371 = vmatpush1.bf16.msra.mxu0 %v1001
    %1372 = vmatprep.subr.bf16.mxu0 %v1006
    %1373 = vmatpush1.bf16.msra.mxu0 %v1005
    %1374 = vmatprep.subr.bf16.mxu0 %v1010
    %1375 = vmatpush1.bf16.msra.mxu0 %v1009
    %1376 = vmatprep.subr.bf16.mxu0 %v1014
    %1377 = vmatpush1.bf16.msra.mxu0 %v1013
    %1378 = vmatprep.subr.bf16.mxu0 %v1018
    %1379 = vmatpush1.bf16.msra.mxu0 %v1017
    %1380 = vmatprep.subr.bf16.mxu0 %v1022
    %1381 = vmatpush1.bf16.msra.mxu0 %v1021
    %1382 = vmatprep.subr.bf16.mxu0 %v1026
    %1383 = vmatpush1.bf16.msra.mxu0 %v1025
    %1384 = vmatprep.subr.bf16.mxu0 %v1030
    %1385 = vmatpush1.bf16.msra.mxu0 %v1029
    %1386 = vmatprep.subr.bf16.mxu0 %v1034
    %1387 = vmatpush1.bf16.msra.mxu0 %v1033
    %1388 = vmatprep.subr.bf16.mxu0 %v1038
    %1389 = vmatpush1.bf16.msra.mxu0 %v1037
    %1390 = vmatprep.subr.bf16.mxu0 %v1042
    %1391 = vmatpush1.bf16.msra.mxu0 %v1041
    %1392 = vmatprep.subr.bf16.mxu0 %v1046
    %1393 = vmatpush1.bf16.msra.mxu0 %v1045
    %1394 = vmatprep.subr.bf16.mxu0 %v1050
    %1395 = vmatpush1.bf16.msra.mxu0 %v1049
    %1396 = vmatprep.mubr.bf16.mxu0 %v327
    %1397 = vmatmul.mubr.bf16.gmra.mrb[0].mxu0 %v326
    %v1398 = vpop.f32.mrb[0].mxu0
    %v1399 = vadd.f32 %v1356, %v1398
    %v1400 = vpop.f32.mrb[0].mxu0
    %v1401 = vadd.f32 %v1358, %v1400
    %v1402 = vpop.f32.mrb[0].mxu0
    %v1403 = vadd.f32 %v1360, %v1402
    %v1404 = vpop.f32.mrb[0].mxu0
    %v1405 = vadd.f32 %v1362, %v1404
    %1406 = vdwg.mxu0
    %1407 = vmatprep.subr.bf16.mxu0 %v1054
    %1408 = vmatpush1.bf16.msra.mxu0 %v1053
    %1409 = vmatprep.subr.bf16.mxu0 %v1058
    %1410 = vmatpush1.bf16.msra.mxu0 %v1057
    %1411 = vmatprep.subr.bf16.mxu0 %v1062
    %1412 = vmatpush1.bf16.msra.mxu0 %v1061
    %1413 = vmatprep.subr.bf16.mxu0 %v1066
    %1414 = vmatpush1.bf16.msra.mxu0 %v1065
    %1415 = vmatprep.subr.bf16.mxu0 %v1070
    %1416 = vmatpush1.bf16.msra.mxu0 %v1069
    %1417 = vmatprep.subr.bf16.mxu0 %v1074
    %1418 = vmatpush1.bf16.msra.mxu0 %v1073
    %1419 = vmatprep.subr.bf16.mxu0 %v1078
    %1420 = vmatpush1.bf16.msra.mxu0 %v1077
    %1421 = vmatprep.subr.bf16.mxu0 %v1082
    %1422 = vmatpush1.bf16.msra.mxu0 %v1081
    %1423 = vmatprep.subr.bf16.mxu0 %v1086
    %1424 = vmatpush1.bf16.msra.mxu0 %v1085
    %1425 = vmatprep.subr.bf16.mxu0 %v1090
    %1426 = vmatpush1.bf16.msra.mxu0 %v1089
    %1427 = vmatprep.subr.bf16.mxu0 %v1094
    %1428 = vmatpush1.bf16.msra.mxu0 %v1093
    %1429 = vmatprep.subr.bf16.mxu0 %v1098
    %1430 = vmatpush1.bf16.msra.mxu0 %v1097
    %1431 = vmatprep.subr.bf16.mxu0 %v1102
    %1432 = vmatpush1.bf16.msra.mxu0 %v1101
    %1433 = vmatprep.subr.bf16.mxu0 %v1106
    %1434 = vmatpush1.bf16.msra.mxu0 %v1105
    %1435 = vmatprep.subr.bf16.mxu0 %v1110
    %1436 = vmatpush1.bf16.msra.mxu0 %v1109
    %1437 = vmatprep.subr.bf16.mxu0 %v1114
    %1438 = vmatpush1.bf16.msra.mxu0 %v1113
    %1439 = vmatprep.mubr.bf16.mxu0 %v329
    %1440 = vmatmul.mubr.bf16.gmra.mrb[0].mxu0 %v328
    %v1441 = vpop.f32.mrb[0].mxu0
    %v1442 = vadd.f32 %v1399, %v1441
    %v1443 = vpop.f32.mrb[0].mxu0
    %v1444 = vadd.f32 %v1401, %v1443
    %v1445 = vpop.f32.mrb[0].mxu0
    %v1446 = vadd.f32 %v1403, %v1445
    %v1447 = vpop.f32.mrb[0].mxu0
    %v1448 = vadd.f32 %v1405, %v1447
    %1449 = vdwg.mxu0
    %1450 = vmatprep.subr.bf16.mxu0 %v1118
    %1451 = vmatpush1.bf16.msra.mxu0 %v1117
    %1452 = vmatprep.subr.bf16.mxu0 0
    %1453 = vmatpush1.bf16.msra.mxu0 0
    %1454 = vmatprep.subr.bf16.mxu0 0
    %1455 = vmatpush1.bf16.msra.mxu0 0
    %1456 = vmatprep.subr.bf16.mxu0 0
    %1457 = vmatpush1.bf16.msra.mxu0 0
    %1458 = vmatprep.subr.bf16.mxu0 0
    %1459 = vmatpush1.bf16.msra.mxu0 0
    %1460 = vmatprep.subr.bf16.mxu0 0
    %1461 = vmatpush1.bf16.msra.mxu0 0
    %1462 = vmatprep.subr.bf16.mxu0 0
    %1463 = vmatpush1.bf16.msra.mxu0 0
    %1464 = vmatprep.subr.bf16.mxu0 0
    %1465 = vmatpush1.bf16.msra.mxu0 0
    %1466 = vmatprep.subr.bf16.mxu0 0
    %1467 = vmatpush1.bf16.msra.mxu0 0
    %1468 = vmatprep.subr.bf16.mxu0 0
    %1469 = vmatpush1.bf16.msra.mxu0 0
    %1470 = vmatprep.subr.bf16.mxu0 0
    %1471 = vmatpush1.bf16.msra.mxu0 0
    %1472 = vmatprep.subr.bf16.mxu0 0
    %1473 = vmatpush1.bf16.msra.mxu0 0
    %1474 = vmatprep.subr.bf16.mxu0 0
    %1475 = vmatpush1.bf16.msra.mxu0 0
    %1476 = vmatprep.subr.bf16.mxu0 0
    %1477 = vmatpush1.bf16.msra.mxu0 0
    %1478 = vmatprep.subr.bf16.mxu0 0
    %1479 = vmatpush1.bf16.msra.mxu0 0
    %1480 = vmatprep.subr.bf16.mxu0 0
    %1481 = vmatpush1.bf16.msra.mxu0 0
    %1482 = vmatprep.mubr.bf16.mxu0 0
    %1483 = vmatmul.mubr.bf16.gmra.mrb[0].mxu0 %v1319
    %v1484 = vpop.f32.mrb[0].mxu0
    %v1485 = vadd.f32 %v1442, %v1484
    %v1486 = vpop.f32.mrb[0].mxu0
    %v1487 = vadd.f32 %v1444, %v1486
    %v1488 = vpop.f32.mrb[0].mxu0
    %v1489 = vadd.f32 %v1446, %v1488
    %v1490 = vpop.f32.mrb[0].mxu0
    %v1491 = vadd.f32 %v1448, %v1490
    %1492 = vdwg.mxu0
    %1493 = vmatprep.subr.bf16.mxu0 %v928
    %1494 = vmatpush1.bf16.msra.mxu0 %v927
    %1495 = vmatprep.subr.bf16.mxu0 %v932
    %1496 = vmatpush1.bf16.msra.mxu0 %v931
    %1497 = vmatprep.subr.bf16.mxu0 %v936
    %1498 = vmatpush1.bf16.msra.mxu0 %v935
    %1499 = vmatprep.subr.bf16.mxu0 %v940
    %1500 = vmatpush1.bf16.msra.mxu0 %v939
    %1501 = vmatprep.subr.bf16.mxu0 %v944
    %1502 = vmatpush1.bf16.msra.mxu0 %v943
    %1503 = vmatprep.subr.bf16.mxu0 %v948
    %1504 = vmatpush1.bf16.msra.mxu0 %v947
    %1505 = vmatprep.subr.bf16.mxu0 %v952
    %1506 = vmatpush1.bf16.msra.mxu0 %v951
    %1507 = vmatprep.subr.bf16.mxu0 %v956
    %1508 = vmatpush1.bf16.msra.mxu0 %v955
    %1509 = vmatprep.subr.bf16.mxu0 %v960
    %1510 = vmatpush1.bf16.msra.mxu0 %v959
    %1511 = vmatprep.subr.bf16.mxu0 %v964
    %1512 = vmatpush1.bf16.msra.mxu0 %v963
    %1513 = vmatprep.subr.bf16.mxu0 %v968
    %1514 = vmatpush1.bf16.msra.mxu0 %v967
    %1515 = vmatprep.subr.bf16.mxu0 %v972
    %1516 = vmatpush1.bf16.msra.mxu0 %v971
    %1517 = vmatprep.subr.bf16.mxu0 %v976
    %1518 = vmatpush1.bf16.msra.mxu0 %v975
    %1519 = vmatprep.subr.bf16.mxu0 %v980
    %1520 = vmatpush1.bf16.msra.mxu0 %v979
    %1521 = vmatprep.subr.bf16.mxu0 %v984
    %1522 = vmatpush1.bf16.msra.mxu0 %v983
    %1523 = vmatprep.subr.bf16.mxu0 %v988
    %1524 = vmatpush1.bf16.msra.mxu0 %v987
    %1525 = vmatprep.mubr.bf16.mxu0 %v325
    %1526 = vmatmul.mubr.bf16.gmra.mrb[0].mxu0 %v324
    %v1527 = vpop.f32.mrb[0].mxu0
    %v1528 = vadd.f32 %v293, %v1527
    %v1529 = vpop.f32.mrb[0].mxu0
    %v1530 = vadd.f32 %v297, %v1529
    %v1531 = vpop.f32.mrb[0].mxu0
    %v1532 = vadd.f32 %v293, %v1531
    %v1533 = vpop.f32.mrb[0].mxu0
    %v1534 = vadd.f32 %v297, %v1533
    %1535 = vdwg.mxu0
    %1536 = vmatprep.subr.bf16.mxu0 %v992
    %1537 = vmatpush1.bf16.msra.mxu0 %v991
    %1538 = vmatprep.subr.bf16.mxu0 %v996
    %1539 = vmatpush1.bf16.msra.mxu0 %v995
    %1540 = vmatprep.subr.bf16.mxu0 %v1000
    %1541 = vmatpush1.bf16.msra.mxu0 %v999
    %1542 = vmatprep.subr.bf16.mxu0 %v1004
    %1543 = vmatpush1.bf16.msra.mxu0 %v1003
    %1544 = vmatprep.subr.bf16.mxu0 %v1008
    %1545 = vmatpush1.bf16.msra.mxu0 %v1007
    %1546 = vmatprep.subr.bf16.mxu0 %v1012
    %1547 = vmatpush1.bf16.msra.mxu0 %v1011
    %1548 = vmatprep.subr.bf16.mxu0 %v1016
    %1549 = vmatpush1.bf16.msra.mxu0 %v1015
    %1550 = vmatprep.subr.bf16.mxu0 %v1020
    %1551 = vmatpush1.bf16.msra.mxu0 %v1019
    %1552 = vmatprep.subr.bf16.mxu0 %v1024
    %1553 = vmatpush1.bf16.msra.mxu0 %v1023
    %1554 = vmatprep.subr.bf16.mxu0 %v1028
    %1555 = vmatpush1.bf16.msra.mxu0 %v1027
    %1556 = vmatprep.subr.bf16.mxu0 %v1032
    %1557 = vmatpush1.bf16.msra.mxu0 %v1031
    %1558 = vmatprep.subr.bf16.mxu0 %v1036
    %1559 = vmatpush1.bf16.msra.mxu0 %v1035
    %1560 = vmatprep.subr.bf16.mxu0 %v1040
    %1561 = vmatpush1.bf16.msra.mxu0 %v1039
    %1562 = vmatprep.subr.bf16.mxu0 %v1044
    %1563 = vmatpush1.bf16.msra.mxu0 %v1043
    %1564 = vmatprep.subr.bf16.mxu0 %v1048
    %1565 = vmatpush1.bf16.msra.mxu0 %v1047
    %1566 = vmatprep.subr.bf16.mxu0 %v1052
    %1567 = vmatpush1.bf16.msra.mxu0 %v1051
    %1568 = vmatprep.mubr.bf16.mxu0 %v327
    %1569 = vmatmul.mubr.bf16.gmra.mrb[0].mxu0 %v326
    %v1570 = vpop.f32.mrb[0].mxu0
    %v1571 = vadd.f32 %v1528, %v1570
    %v1572 = vpop.f32.mrb[0].mxu0
    %v1573 = vadd.f32 %v1530, %v1572
    %v1574 = vpop.f32.mrb[0].mxu0
    %v1575 = vadd.f32 %v1532, %v1574
    %v1576 = vpop.f32.mrb[0].mxu0
    %v1577 = vadd.f32 %v1534, %v1576
    %1578 = vdwg.mxu0
    %1579 = vmatprep.subr.bf16.mxu0 %v1056
    %1580 = vmatpush1.bf16.msra.mxu0 %v1055
    %1581 = vmatprep.subr.bf16.mxu0 %v1060
    %1582 = vmatpush1.bf16.msra.mxu0 %v1059
    %1583 = vmatprep.subr.bf16.mxu0 %v1064
    %1584 = vmatpush1.bf16.msra.mxu0 %v1063
    %1585 = vmatprep.subr.bf16.mxu0 %v1068
    %1586 = vmatpush1.bf16.msra.mxu0 %v1067
    %1587 = vmatprep.subr.bf16.mxu0 %v1072
    %1588 = vmatpush1.bf16.msra.mxu0 %v1071
    %1589 = vmatprep.subr.bf16.mxu0 %v1076
    %1590 = vmatpush1.bf16.msra.mxu0 %v1075
    %1591 = vmatprep.subr.bf16.mxu0 %v1080
    %1592 = vmatpush1.bf16.msra.mxu0 %v1079
    %1593 = vmatprep.subr.bf16.mxu0 %v1084
    %1594 = vmatpush1.bf16.msra.mxu0 %v1083
    %1595 = vmatprep.subr.bf16.mxu0 %v1088
    %1596 = vmatpush1.bf16.msra.mxu0 %v1087
    %1597 = vmatprep.subr.bf16.mxu0 %v1092
    %1598 = vmatpush1.bf16.msra.mxu0 %v1091
    %1599 = vmatprep.subr.bf16.mxu0 %v1096
    %1600 = vmatpush1.bf16.msra.mxu0 %v1095
    %1601 = vmatprep.subr.bf16.mxu0 %v1100
    %1602 = vmatpush1.bf16.msra.mxu0 %v1099
    %1603 = vmatprep.subr.bf16.mxu0 %v1104
    %1604 = vmatpush1.bf16.msra.mxu0 %v1103
    %1605 = vmatprep.subr.bf16.mxu0 %v1108
    %1606 = vmatpush1.bf16.msra.mxu0 %v1107
    %1607 = vmatprep.subr.bf16.mxu0 %v1112
    %1608 = vmatpush1.bf16.msra.mxu0 %v1111
    %1609 = vmatprep.subr.bf16.mxu0 %v1116
    %1610 = vmatpush1.bf16.msra.mxu0 %v1115
    %1611 = vmatprep.mubr.bf16.mxu0 %v329
    %1612 = vmatmul.mubr.bf16.gmra.mrb[0].mxu0 %v328
    %v1613 = vpop.f32.mrb[0].mxu0
    %v1614 = vadd.f32 %v1571, %v1613
    %v1615 = vpop.f32.mrb[0].mxu0
    %v1616 = vadd.f32 %v1573, %v1615
    %v1617 = vpop.f32.mrb[0].mxu0
    %v1618 = vadd.f32 %v1575, %v1617
    %v1619 = vpop.f32.mrb[0].mxu0
    %v1620 = vadd.f32 %v1577, %v1619
    %1621 = vdwg.mxu0
    %1622 = vmatprep.subr.bf16.mxu0 %v1120
    %1623 = vmatpush1.bf16.msra.mxu0 %v1119
    %1624 = vmatprep.subr.bf16.mxu0 0
    %1625 = vmatpush1.bf16.msra.mxu0 0
    %1626 = vmatprep.subr.bf16.mxu0 0
    %1627 = vmatpush1.bf16.msra.mxu0 0
    %1628 = vmatprep.subr.bf16.mxu0 0
    %1629 = vmatpush1.bf16.msra.mxu0 0
    %1630 = vmatprep.subr.bf16.mxu0 0
    %1631 = vmatpush1.bf16.msra.mxu0 0
    %1632 = vmatprep.subr.bf16.mxu0 0
    %1633 = vmatpush1.bf16.msra.mxu0 0
    %1634 = vmatprep.subr.bf16.mxu0 0
    %1635 = vmatpush1.bf16.msra.mxu0 0
    %1636 = vmatprep.subr.bf16.mxu0 0
    %1637 = vmatpush1.bf16.msra.mxu0 0
    %1638 = vmatprep.subr.bf16.mxu0 0
    %1639 = vmatpush1.bf16.msra.mxu0 0
    %1640 = vmatprep.subr.bf16.mxu0 0
    %1641 = vmatpush1.bf16.msra.mxu0 0
    %1642 = vmatprep.subr.bf16.mxu0 0
    %1643 = vmatpush1.bf16.msra.mxu0 0
    %1644 = vmatprep.subr.bf16.mxu0 0
    %1645 = vmatpush1.bf16.msra.mxu0 0
    %1646 = vmatprep.subr.bf16.mxu0 0
    %1647 = vmatpush1.bf16.msra.mxu0 0
    %1648 = vmatprep.subr.bf16.mxu0 0
    %1649 = vmatpush1.bf16.msra.mxu0 0
    %1650 = vmatprep.subr.bf16.mxu0 0
    %1651 = vmatpush1.bf16.msra.mxu0 0
    %1652 = vmatprep.subr.bf16.mxu0 0
    %1653 = vmatpush1.bf16.msra.mxu0 0
    %1654 = vmatprep.mubr.bf16.mxu0 0
    %1655 = vmatmul.mubr.bf16.gmra.mrb[0].mxu0 %v1319
    %v1656 = vpop.f32.mrb[0].mxu0
    %v1657 = vadd.f32 %v1614, %v1656
    %v1658 = vpop.f32.mrb[0].mxu0
    %v1659 = vadd.f32 %v1616, %v1658
    %v1660 = vpop.f32.mrb[0].mxu0
    %v1661 = vadd.f32 %v1618, %v1660
    %v1662 = vpop.f32.mrb[0].mxu0
    %v1663 = vadd.f32 %v1620, %v1662
    %1664 = vdwg.mxu0
    %v1665 = vmax.f32 %v1485, 0.0
    %v1666 = vmax.f32 %v1487, 0.0
    %v1667 = vmax.f32 %v1657, 0.0
    %v1668 = vmax.f32 %v1659, 0.0
    %v1669 = vmax.f32 %v1489, 0.0
    %v1670 = vmax.f32 %v1491, 0.0
    %v1671 = vmax.f32 %v1661, 0.0
    %v1672 = vmax.f32 %v1663, 0.0
    %v1673 = vpack.c.bf16 %v1669, %v1665
    %v1674 = vpack.c.bf16 %v1670, %v1666
    %v1675 = vpack.c.bf16 %v1671, %v1667
    %v1676 = vpack.c.bf16 %v1672, %v1668
    %v1677 = vld [vmem:[%s3] sm:$0xff]
    %v1678 = vld [vmem:[%s3 + $0x8] sm:$0xff]
    %v1679 = vld [vmem:[%s3 + $0x10] sm:$0xff]
    %v1680 = vld [vmem:[%s3 + $0x18] sm:$0xff]
    %v1681 = vld [vmem:[%s3 + $0x20] sm:$0xff]
    %v1682 = vld [vmem:[%s3 + $0x28] sm:$0xff]
    %v1683 = vld [vmem:[%s3 + $0x30] sm:$0xff]
    %v1684 = vld [vmem:[%s3 + $0x38] sm:$0xff]
    %v1685 = vld [vmem:[%s3 + $0x40] sm:$0xff]
    %v1686 = vld [vmem:[%s3 + $0x48] sm:$0xff]
    %v1687 = vld [vmem:[%s3 + $0x50] sm:$0xff]
    %v1688 = vld [vmem:[%s3 + $0x58] sm:$0xff]
    %v1689 = vld [vmem:[%s3 + $0x60] sm:$0xff]
    %v1690 = vld [vmem:[%s3 + $0x68] sm:$0xff]
    %v1691 = vld [vmem:[%s3 + $0x70] sm:$0xff]
    %v1692 = vld [vmem:[%s3 + $0x78] sm:$0xff]
    %v1693 = vld [vmem:[%s3 + $0x80] sm:$0xff]
    %v1694 = vld [vmem:[%s3 + $0x88] sm:$0xff]
    %v1695 = vld [vmem:[%s3 + $0x90] sm:$0xff]
    %v1696 = vld [vmem:[%s3 + $0x98] sm:$0xff]
    %v1697 = vld [vmem:[%s3 + $0xa0] sm:$0xff]
    %v1698 = vld [vmem:[%s3 + $0xa8] sm:$0xff]
    %v1699 = vld [vmem:[%s3 + $0xb0] sm:$0xff]
    %v1700 = vld [vmem:[%s3 + $0xb8] sm:$0xff]
    %v1701 = vld [vmem:[%s3 + $0xc0] sm:$0xff]
    %v1702 = vld [vmem:[%s3 + $0xc8] sm:$0xff]
    %v1703 = vld [vmem:[%s3 + $0xd0] sm:$0xff]
    %v1704 = vld [vmem:[%s3 + $0xd8] sm:$0xff]
    %v1705 = vld [vmem:[%s3 + $0xe0] sm:$0xff]
    %v1706 = vld [vmem:[%s3 + $0xe8] sm:$0xff]
    %v1707 = vld [vmem:[%s3 + $0xf0] sm:$0xff]
    %v1708 = vld [vmem:[%s3 + $0xf8] sm:$0xff]
    %v1709 = vld [vmem:[%s3 + $0x100] sm:$0xff]
    %v1710 = vld [vmem:[%s3 + $0x108] sm:$0xff]
    %v1711 = vld [vmem:[%s3 + $0x110] sm:$0xff]
    %v1712 = vld [vmem:[%s3 + $0x118] sm:$0xff]
    %v1713 = vld [vmem:[%s3 + $0x120] sm:$0xff]
    %v1714 = vld [vmem:[%s3 + $0x128] sm:$0xff]
    %v1715 = vld [vmem:[%s3 + $0x130] sm:$0xff]
    %v1716 = vld [vmem:[%s3 + $0x138] sm:$0xff]
    %v1717 = vld [vmem:[%s3 + $0x140] sm:$0xff]
    %v1718 = vld [vmem:[%s3 + $0x148] sm:$0xff]
    %v1719 = vld [vmem:[%s3 + $0x150] sm:$0xff]
    %v1720 = vld [vmem:[%s3 + $0x158] sm:$0xff]
    %v1721 = vld [vmem:[%s3 + $0x160] sm:$0xff]
    %v1722 = vld [vmem:[%s3 + $0x168] sm:$0xff]
    %v1723 = vld [vmem:[%s3 + $0x170] sm:$0xff]
    %v1724 = vld [vmem:[%s3 + $0x178] sm:$0xff]
    %v1725 = vld [vmem:[%s3 + $0x180] sm:$0xff]
    %v1726 = vld [vmem:[%s3 + $0x188] sm:$0xff]
    %v1727 = vld [vmem:[%s3 + $0x190] sm:$0xff]
    %v1728 = vld [vmem:[%s3 + $0x198] sm:$0xff]
    %v1729 = vld [vmem:[%s3 + $0x1a0] sm:$0xff]
    %v1730 = vld [vmem:[%s3 + $0x1a8] sm:$0xff]
    %v1731 = vld [vmem:[%s3 + $0x1b0] sm:$0xff]
    %v1732 = vld [vmem:[%s3 + $0x1b8] sm:$0xff]
    %v1733 = vld [vmem:[%s3 + $0x1c0] sm:$0xff]
    %v1734 = vld [vmem:[%s3 + $0x1c8] sm:$0xff]
    %v1735 = vld [vmem:[%s3 + $0x1d0] sm:$0xff]
    %v1736 = vld [vmem:[%s3 + $0x1d8] sm:$0xff]
    %v1737 = vld [vmem:[%s3 + $0x1e0] sm:$0xff]
    %v1738 = vld [vmem:[%s3 + $0x1e8] sm:$0xff]
    %v1739 = vld [vmem:[%s3 + $0x1f0] sm:$0xff]
    %v1740 = vld [vmem:[%s3 + $0x1f8] sm:$0xff]
    %v1741 = vld [vmem:[%s4] sm:$0x3]
    %v1743 = vlaneseq
    %v1744 = vshrl.u32 %v1743, 7
    %v1745 = vsub.s32 0, %v1744
    %v1746 = vrot.slane %v1741, %v1745
    %v1747 = vlaneseq
    %v1748 = vshrl.u32 %v1747, 7
    %v1749 = vsub.s32 1, %v1748
    %v1750 = vrot.slane %v1741, %v1749
    %v1817 = vunpack.c.l.b16 %v1677
    %v1818 = vunpack.c.h.b16 %v1677
    %v1819 = vunpack.c.l.b16 %v1678
    %v1820 = vunpack.c.h.b16 %v1678
    %v1821 = vunpack.c.l.b16 %v1679
    %v1822 = vunpack.c.h.b16 %v1679
    %v1823 = vunpack.c.l.b16 %v1680
    %v1824 = vunpack.c.h.b16 %v1680
    %v1825 = vunpack.c.l.b16 %v1681
    %v1826 = vunpack.c.h.b16 %v1681
    %v1827 = vunpack.c.l.b16 %v1682
    %v1828 = vunpack.c.h.b16 %v1682
    %v1829 = vunpack.c.l.b16 %v1683
    %v1830 = vunpack.c.h.b16 %v1683
    %v1831 = vunpack.c.l.b16 %v1684
    %v1832 = vunpack.c.h.b16 %v1684
    %v1833 = vunpack.c.l.b16 %v1685
    %v1834 = vunpack.c.h.b16 %v1685
    %v1835 = vunpack.c.l.b16 %v1686
    %v1836 = vunpack.c.h.b16 %v1686
    %v1837 = vunpack.c.l.b16 %v1687
    %v1838 = vunpack.c.h.b16 %v1687
    %v1839 = vunpack.c.l.b16 %v1688
    %v1840 = vunpack.c.h.b16 %v1688
    %v1841 = vunpack.c.l.b16 %v1689
    %v1842 = vunpack.c.h.b16 %v1689
    %v1843 = vunpack.c.l.b16 %v1690
    %v1844 = vunpack.c.h.b16 %v1690
    %v1845 = vunpack.c.l.b16 %v1691
    %v1846 = vunpack.c.h.b16 %v1691
    %v1847 = vunpack.c.l.b16 %v1692
    %v1848 = vunpack.c.h.b16 %v1692
    %v1849 = vunpack.c.l.b16 %v1693
    %v1850 = vunpack.c.h.b16 %v1693
    %v1851 = vunpack.c.l.b16 %v1694
    %v1852 = vunpack.c.h.b16 %v1694
    %v1853 = vunpack.c.l.b16 %v1695
    %v1854 = vunpack.c.h.b16 %v1695
    %v1855 = vunpack.c.l.b16 %v1696
    %v1856 = vunpack.c.h.b16 %v1696
    %v1857 = vunpack.c.l.b16 %v1697
    %v1858 = vunpack.c.h.b16 %v1697
    %v1859 = vunpack.c.l.b16 %v1698
    %v1860 = vunpack.c.h.b16 %v1698
    %v1861 = vunpack.c.l.b16 %v1699
    %v1862 = vunpack.c.h.b16 %v1699
    %v1863 = vunpack.c.l.b16 %v1700
    %v1864 = vunpack.c.h.b16 %v1700
    %v1865 = vunpack.c.l.b16 %v1701
    %v1866 = vunpack.c.h.b16 %v1701
    %v1867 = vunpack.c.l.b16 %v1702
    %v1868 = vunpack.c.h.b16 %v1702
    %v1869 = vunpack.c.l.b16 %v1703
    %v1870 = vunpack.c.h.b16 %v1703
    %v1871 = vunpack.c.l.b16 %v1704
    %v1872 = vunpack.c.h.b16 %v1704
    %v1873 = vunpack.c.l.b16 %v1705
    %v1874 = vunpack.c.h.b16 %v1705
    %v1875 = vunpack.c.l.b16 %v1706
    %v1876 = vunpack.c.h.b16 %v1706
    %v1877 = vunpack.c.l.b16 %v1707
    %v1878 = vunpack.c.h.b16 %v1707
    %v1879 = vunpack.c.l.b16 %v1708
    %v1880 = vunpack.c.h.b16 %v1708
    %v1881 = vunpack.c.l.b16 %v1709
    %v1882 = vunpack.c.h.b16 %v1709
    %v1883 = vunpack.c.l.b16 %v1710
    %v1884 = vunpack.c.h.b16 %v1710
    %v1885 = vunpack.c.l.b16 %v1711
    %v1886 = vunpack.c.h.b16 %v1711
    %v1887 = vunpack.c.l.b16 %v1712
    %v1888 = vunpack.c.h.b16 %v1712
    %v1889 = vunpack.c.l.b16 %v1713
    %v1890 = vunpack.c.h.b16 %v1713
    %v1891 = vunpack.c.l.b16 %v1714
    %v1892 = vunpack.c.h.b16 %v1714
    %v1893 = vunpack.c.l.b16 %v1715
    %v1894 = vunpack.c.h.b16 %v1715
    %v1895 = vunpack.c.l.b16 %v1716
    %v1896 = vunpack.c.h.b16 %v1716
    %v1897 = vunpack.c.l.b16 %v1717
    %v1898 = vunpack.c.h.b16 %v1717
    %v1899 = vunpack.c.l.b16 %v1718
    %v1900 = vunpack.c.h.b16 %v1718
    %v1901 = vunpack.c.l.b16 %v1719
    %v1902 = vunpack.c.h.b16 %v1719
    %v1903 = vunpack.c.l.b16 %v1720
    %v1904 = vunpack.c.h.b16 %v1720
    %v1905 = vunpack.c.l.b16 %v1721
    %v1906 = vunpack.c.h.b16 %v1721
    %v1907 = vunpack.c.l.b16 %v1722
    %v1908 = vunpack.c.h.b16 %v1722
    %v1909 = vunpack.c.l.b16 %v1723
    %v1910 = vunpack.c.h.b16 %v1723
    %v1911 = vunpack.c.l.b16 %v1724
    %v1912 = vunpack.c.h.b16 %v1724
    %v1913 = vunpack.c.l.b16 %v1725
    %v1914 = vunpack.c.h.b16 %v1725
    %v1915 = vunpack.c.l.b16 %v1726
    %v1916 = vunpack.c.h.b16 %v1726
    %v1917 = vunpack.c.l.b16 %v1727
    %v1918 = vunpack.c.h.b16 %v1727
    %v1919 = vunpack.c.l.b16 %v1728
    %v1920 = vunpack.c.h.b16 %v1728
    %v1921 = vunpack.c.l.b16 %v1729
    %v1922 = vunpack.c.h.b16 %v1729
    %v1923 = vunpack.c.l.b16 %v1730
    %v1924 = vunpack.c.h.b16 %v1730
    %v1925 = vunpack.c.l.b16 %v1731
    %v1926 = vunpack.c.h.b16 %v1731
    %v1927 = vunpack.c.l.b16 %v1732
    %v1928 = vunpack.c.h.b16 %v1732
    %v1929 = vunpack.c.l.b16 %v1733
    %v1930 = vunpack.c.h.b16 %v1733
    %v1931 = vunpack.c.l.b16 %v1734
    %v1932 = vunpack.c.h.b16 %v1734
    %v1933 = vunpack.c.l.b16 %v1735
    %v1934 = vunpack.c.h.b16 %v1735
    %v1935 = vunpack.c.l.b16 %v1736
    %v1936 = vunpack.c.h.b16 %v1736
    %v1937 = vunpack.c.l.b16 %v1737
    %v1938 = vunpack.c.h.b16 %v1737
    %v1939 = vunpack.c.l.b16 %v1738
    %v1940 = vunpack.c.h.b16 %v1738
    %v1941 = vunpack.c.l.b16 %v1739
    %v1942 = vunpack.c.h.b16 %v1739
    %v1943 = vunpack.c.l.b16 %v1740
    %v1944 = vunpack.c.h.b16 %v1740
    %v1945 = vpack.c.b16 %v1819, %v1817
    %v1946 = vpack.c.b16 %v1820, %v1818
    %v1947 = vpack.c.b16 %v1823, %v1821
    %v1948 = vpack.c.b16 %v1824, %v1822
    %v1949 = vpack.c.b16 %v1827, %v1825
    %v1950 = vpack.c.b16 %v1828, %v1826
    %v1951 = vpack.c.b16 %v1831, %v1829
    %v1952 = vpack.c.b16 %v1832, %v1830
    %v1953 = vpack.c.b16 %v1835, %v1833
    %v1954 = vpack.c.b16 %v1836, %v1834
    %v1955 = vpack.c.b16 %v1839, %v1837
    %v1956 = vpack.c.b16 %v1840, %v1838
    %v1957 = vpack.c.b16 %v1843, %v1841
    %v1958 = vpack.c.b16 %v1844, %v1842
    %v1959 = vpack.c.b16 %v1847, %v1845
    %v1960 = vpack.c.b16 %v1848, %v1846
    %v1961 = vpack.c.b16 %v1851, %v1849
    %v1962 = vpack.c.b16 %v1852, %v1850
    %v1963 = vpack.c.b16 %v1855, %v1853
    %v1964 = vpack.c.b16 %v1856, %v1854
    %v1965 = vpack.c.b16 %v1859, %v1857
    %v1966 = vpack.c.b16 %v1860, %v1858
    %v1967 = vpack.c.b16 %v1863, %v1861
    %v1968 = vpack.c.b16 %v1864, %v1862
    %v1969 = vpack.c.b16 %v1867, %v1865
    %v1970 = vpack.c.b16 %v1868, %v1866
    %v1971 = vpack.c.b16 %v1871, %v1869
    %v1972 = vpack.c.b16 %v1872, %v1870
    %v1973 = vpack.c.b16 %v1875, %v1873
    %v1974 = vpack.c.b16 %v1876, %v1874
    %v1975 = vpack.c.b16 %v1879, %v1877
    %v1976 = vpack.c.b16 %v1880, %v1878
    %v1977 = vpack.c.b16 %v1883, %v1881
    %v1978 = vpack.c.b16 %v1884, %v1882
    %v1979 = vpack.c.b16 %v1887, %v1885
    %v1980 = vpack.c.b16 %v1888, %v1886
    %v1981 = vpack.c.b16 %v1891, %v1889
    %v1982 = vpack.c.b16 %v1892, %v1890
    %v1983 = vpack.c.b16 %v1895, %v1893
    %v1984 = vpack.c.b16 %v1896, %v1894
    %v1985 = vpack.c.b16 %v1899, %v1897
    %v1986 = vpack.c.b16 %v1900, %v1898
    %v1987 = vpack.c.b16 %v1903, %v1901
    %v1988 = vpack.c.b16 %v1904, %v1902
    %v1989 = vpack.c.b16 %v1907, %v1905
    %v1990 = vpack.c.b16 %v1908, %v1906
    %v1991 = vpack.c.b16 %v1911, %v1909
    %v1992 = vpack.c.b16 %v1912, %v1910
    %v1993 = vpack.c.b16 %v1915, %v1913
    %v1994 = vpack.c.b16 %v1916, %v1914
    %v1995 = vpack.c.b16 %v1919, %v1917
    %v1996 = vpack.c.b16 %v1920, %v1918
    %v1997 = vpack.c.b16 %v1923, %v1921
    %v1998 = vpack.c.b16 %v1924, %v1922
    %v1999 = vpack.c.b16 %v1927, %v1925
    %v2000 = vpack.c.b16 %v1928, %v1926
    %v2001 = vpack.c.b16 %v1931, %v1929
    %v2002 = vpack.c.b16 %v1932, %v1930
    %v2003 = vpack.c.b16 %v1935, %v1933
    %v2004 = vpack.c.b16 %v1936, %v1934
    %v2005 = vpack.c.b16 %v1939, %v1937
    %v2006 = vpack.c.b16 %v1940, %v1938
    %v2007 = vpack.c.b16 %v1943, %v1941
    %v2008 = vpack.c.b16 %v1944, %v1942
    %2073 = vmatprep.subr.bf16.mxu0 %v1946
    %2074 = vmatpush1.bf16.msra.mxu0 %v1945
    %2075 = vmatprep.subr.bf16.mxu0 %v1948
    %2076 = vmatpush1.bf16.msra.mxu0 %v1947
    %2077 = vmatprep.subr.bf16.mxu0 %v1950
    %2078 = vmatpush1.bf16.msra.mxu0 %v1949
    %2079 = vmatprep.subr.bf16.mxu0 %v1952
    %2080 = vmatpush1.bf16.msra.mxu0 %v1951
    %2081 = vmatprep.subr.bf16.mxu0 %v1954
    %2082 = vmatpush1.bf16.msra.mxu0 %v1953
    %2083 = vmatprep.subr.bf16.mxu0 %v1956
    %2084 = vmatpush1.bf16.msra.mxu0 %v1955
    %2085 = vmatprep.subr.bf16.mxu0 %v1958
    %2086 = vmatpush1.bf16.msra.mxu0 %v1957
    %2087 = vmatprep.subr.bf16.mxu0 %v1960
    %2088 = vmatpush1.bf16.msra.mxu0 %v1959
    %2089 = vmatprep.subr.bf16.mxu0 %v1962
    %2090 = vmatpush1.bf16.msra.mxu0 %v1961
    %2091 = vmatprep.subr.bf16.mxu0 %v1964
    %2092 = vmatpush1.bf16.msra.mxu0 %v1963
    %2093 = vmatprep.subr.bf16.mxu0 %v1966
    %2094 = vmatpush1.bf16.msra.mxu0 %v1965
    %2095 = vmatprep.subr.bf16.mxu0 %v1968
    %2096 = vmatpush1.bf16.msra.mxu0 %v1967
    %2097 = vmatprep.subr.bf16.mxu0 %v1970
    %2098 = vmatpush1.bf16.msra.mxu0 %v1969
    %2099 = vmatprep.subr.bf16.mxu0 %v1972
    %2100 = vmatpush1.bf16.msra.mxu0 %v1971
    %2101 = vmatprep.subr.bf16.mxu0 %v1974
    %2102 = vmatpush1.bf16.msra.mxu0 %v1973
    %2103 = vmatprep.subr.bf16.mxu0 %v1976
    %2104 = vmatpush1.bf16.msra.mxu0 %v1975
    %2105 = vmatprep.mubr.bf16.mxu0 %v1674
    %2106 = vmatmul.mubr.bf16.gmra.mrb[0].mxu0 %v1673
    %v2107 = vpop.f32.mrb[0].mxu0
    %v2108 = vadd.f32 %v1746, %v2107
    %v2109 = vpop.f32.mrb[0].mxu0
    %v2110 = vadd.f32 %v1750, %v2109
    %v2111 = vpop.f32.mrb[0].mxu0
    %v2112 = vadd.f32 %v1746, %v2111
    %v2113 = vpop.f32.mrb[0].mxu0
    %v2114 = vadd.f32 %v1750, %v2113
    %2115 = vdwg.mxu0
    %2116 = vmatprep.subr.bf16.mxu0 %v1978
    %2117 = vmatpush1.bf16.msra.mxu0 %v1977
    %2118 = vmatprep.subr.bf16.mxu0 %v1980
    %2119 = vmatpush1.bf16.msra.mxu0 %v1979
    %2120 = vmatprep.subr.bf16.mxu0 %v1982
    %2121 = vmatpush1.bf16.msra.mxu0 %v1981
    %2122 = vmatprep.subr.bf16.mxu0 %v1984
    %2123 = vmatpush1.bf16.msra.mxu0 %v1983
    %2124 = vmatprep.subr.bf16.mxu0 %v1986
    %2125 = vmatpush1.bf16.msra.mxu0 %v1985
    %2126 = vmatprep.subr.bf16.mxu0 %v1988
    %2127 = vmatpush1.bf16.msra.mxu0 %v1987
    %2128 = vmatprep.subr.bf16.mxu0 %v1990
    %2129 = vmatpush1.bf16.msra.mxu0 %v1989
    %2130 = vmatprep.subr.bf16.mxu0 %v1992
    %2131 = vmatpush1.bf16.msra.mxu0 %v1991
    %2132 = vmatprep.subr.bf16.mxu0 %v1994
    %2133 = vmatpush1.bf16.msra.mxu0 %v1993
    %2134 = vmatprep.subr.bf16.mxu0 %v1996
    %2135 = vmatpush1.bf16.msra.mxu0 %v1995
    %2136 = vmatprep.subr.bf16.mxu0 %v1998
    %2137 = vmatpush1.bf16.msra.mxu0 %v1997
    %2138 = vmatprep.subr.bf16.mxu0 %v2000
    %2139 = vmatpush1.bf16.msra.mxu0 %v1999
    %2140 = vmatprep.subr.bf16.mxu0 %v2002
    %2141 = vmatpush1.bf16.msra.mxu0 %v2001
    %2142 = vmatprep.subr.bf16.mxu0 %v2004
    %2143 = vmatpush1.bf16.msra.mxu0 %v2003
    %2144 = vmatprep.subr.bf16.mxu0 %v2006
    %2145 = vmatpush1.bf16.msra.mxu0 %v2005
    %2146 = vmatprep.subr.bf16.mxu0 %v2008
    %2147 = vmatpush1.bf16.msra.mxu0 %v2007
    %2148 = vmatprep.mubr.bf16.mxu0 %v1676
    %2149 = vmatmul.mubr.bf16.gmra.mrb[0].mxu0 %v1675
    %v2150 = vpop.f32.mrb[0].mxu0
    %v2151 = vadd.f32 %v2108, %v2150
    %v2152 = vpop.f32.mrb[0].mxu0
    %v2153 = vadd.f32 %v2110, %v2152
    %v2154 = vpop.f32.mrb[0].mxu0
    %v2155 = vadd.f32 %v2112, %v2154
    %v2156 = vpop.f32.mrb[0].mxu0
    %v2157 = vadd.f32 %v2114, %v2156
    %2158 = vdwg.mxu0
    %v2159 = vmax.f32 %v2151, 0.0
    %v2160 = vmax.f32 %v2153, 0.0
    %v2161 = vmax.f32 %v2155, 0.0
    %v2162 = vmax.f32 %v2157, 0.0
    %v2163 = vpack.c.bf16 %v2161, %v2159
    %v2164 = vpack.c.bf16 %v2162, %v2160
    %v2165 = vld [vmem:[%s5] sm:$0xf]
    %v2166 = vld [vmem:[%s5 + $0x4] sm:$0xf]
    %v2167 = vld [vmem:[%s5 + $0x8] sm:$0xf]
    %v2168 = vld [vmem:[%s5 + $0xc] sm:$0xf]
    %v2169 = vld [vmem:[%s5 + $0x10] sm:$0xf]
    %v2170 = vld [vmem:[%s5 + $0x14] sm:$0xf]
    %v2171 = vld [vmem:[%s5 + $0x18] sm:$0xf]
    %v2172 = vld [vmem:[%s5 + $0x1c] sm:$0xf]
    %v2173 = vld [vmem:[%s5 + $0x20] sm:$0xf]
    %v2174 = vld [vmem:[%s5 + $0x24] sm:$0xf]
    %v2175 = vld [vmem:[%s5 + $0x28] sm:$0xf]
    %v2176 = vld [vmem:[%s5 + $0x2c] sm:$0xf]
    %v2177 = vld [vmem:[%s5 + $0x30] sm:$0xf]
    %v2178 = vld [vmem:[%s5 + $0x34] sm:$0xf]
    %v2179 = vld [vmem:[%s5 + $0x38] sm:$0xf]
    %v2180 = vld [vmem:[%s5 + $0x3c] sm:$0xf]
    %v2181 = vld [vmem:[%s5 + $0x40] sm:$0xf]
    %v2182 = vld [vmem:[%s5 + $0x44] sm:$0xf]
    %v2183 = vld [vmem:[%s5 + $0x48] sm:$0xf]
    %v2184 = vld [vmem:[%s5 + $0x4c] sm:$0xf]
    %v2185 = vld [vmem:[%s5 + $0x50] sm:$0xf]
    %v2186 = vld [vmem:[%s5 + $0x54] sm:$0xf]
    %v2187 = vld [vmem:[%s5 + $0x58] sm:$0xf]
    %v2188 = vld [vmem:[%s5 + $0x5c] sm:$0xf]
    %v2189 = vld [vmem:[%s5 + $0x60] sm:$0xf]
    %v2190 = vld [vmem:[%s5 + $0x64] sm:$0xf]
    %v2191 = vld [vmem:[%s5 + $0x68] sm:$0xf]
    %v2192 = vld [vmem:[%s5 + $0x6c] sm:$0xf]
    %v2193 = vld [vmem:[%s5 + $0x70] sm:$0xf]
    %v2194 = vld [vmem:[%s5 + $0x74] sm:$0xf]
    %v2195 = vld [vmem:[%s5 + $0x78] sm:$0xf]
    %v2196 = vld [vmem:[%s5 + $0x7c] sm:$0xf]
    %v2197 = vld [vmem:[%s6] sm:$0x1]
    %v2199 = vlaneseq
    %v2200 = vshrl.u32 %v2199, 7
    %v2201 = vsub.s32 0, %v2200
    %v2202 = vrot.slane %v2197, %v2201
    %v2236 = vunpack.c.l.b16 %v2165
    %v2237 = vunpack.c.l.b16 %v2166
    %v2238 = vunpack.c.l.b16 %v2167
    %v2239 = vunpack.c.l.b16 %v2168
    %v2240 = vunpack.c.l.b16 %v2169
    %v2241 = vunpack.c.l.b16 %v2170
    %v2242 = vunpack.c.l.b16 %v2171
    %v2243 = vunpack.c.l.b16 %v2172
    %v2244 = vunpack.c.l.b16 %v2173
    %v2245 = vunpack.c.l.b16 %v2174
    %v2246 = vunpack.c.l.b16 %v2175
    %v2247 = vunpack.c.l.b16 %v2176
    %v2248 = vunpack.c.l.b16 %v2177
    %v2249 = vunpack.c.l.b16 %v2178
    %v2250 = vunpack.c.l.b16 %v2179
    %v2251 = vunpack.c.l.b16 %v2180
    %v2252 = vunpack.c.l.b16 %v2181
    %v2253 = vunpack.c.l.b16 %v2182
    %v2254 = vunpack.c.l.b16 %v2183
    %v2255 = vunpack.c.l.b16 %v2184
    %v2256 = vunpack.c.l.b16 %v2185
    %v2257 = vunpack.c.l.b16 %v2186
    %v2258 = vunpack.c.l.b16 %v2187
    %v2259 = vunpack.c.l.b16 %v2188
    %v2260 = vunpack.c.l.b16 %v2189
    %v2261 = vunpack.c.l.b16 %v2190
    %v2262 = vunpack.c.l.b16 %v2191
    %v2263 = vunpack.c.l.b16 %v2192
    %v2264 = vunpack.c.l.b16 %v2193
    %v2265 = vunpack.c.l.b16 %v2194
    %v2266 = vunpack.c.l.b16 %v2195
    %v2267 = vunpack.c.l.b16 %v2196
    %v2268 = vpack.c.b16 %v2237, %v2236
    %v2269 = vpack.c.b16 %v2239, %v2238
    %v2270 = vpack.c.b16 %v2241, %v2240
    %v2271 = vpack.c.b16 %v2243, %v2242
    %v2272 = vpack.c.b16 %v2245, %v2244
    %v2273 = vpack.c.b16 %v2247, %v2246
    %v2274 = vpack.c.b16 %v2249, %v2248
    %v2275 = vpack.c.b16 %v2251, %v2250
    %v2276 = vpack.c.b16 %v2253, %v2252
    %v2277 = vpack.c.b16 %v2255, %v2254
    %v2278 = vpack.c.b16 %v2257, %v2256
    %v2279 = vpack.c.b16 %v2259, %v2258
    %v2280 = vpack.c.b16 %v2261, %v2260
    %v2281 = vpack.c.b16 %v2263, %v2262
    %v2282 = vpack.c.b16 %v2265, %v2264
    %v2283 = vpack.c.b16 %v2267, %v2266
    %2300 = vmatprep.subr.bf16.mxu0 0
    %2301 = vmatpush1.bf16.msra.mxu0 %v2268
    %2302 = vmatprep.subr.bf16.mxu0 0
    %2303 = vmatpush1.bf16.msra.mxu0 %v2269
    %2304 = vmatprep.subr.bf16.mxu0 0
    %2305 = vmatpush1.bf16.msra.mxu0 %v2270
    %2306 = vmatprep.subr.bf16.mxu0 0
    %2307 = vmatpush1.bf16.msra.mxu0 %v2271
    %2308 = vmatprep.subr.bf16.mxu0 0
    %2309 = vmatpush1.bf16.msra.mxu0 %v2272
    %2310 = vmatprep.subr.bf16.mxu0 0
    %2311 = vmatpush1.bf16.msra.mxu0 %v2273
    %2312 = vmatprep.subr.bf16.mxu0 0
    %2313 = vmatpush1.bf16.msra.mxu0 %v2274
    %2314 = vmatprep.subr.bf16.mxu0 0
    %2315 = vmatpush1.bf16.msra.mxu0 %v2275
    %2316 = vmatprep.subr.bf16.mxu0 0
    %2317 = vmatpush1.bf16.msra.mxu0 %v2276
    %2318 = vmatprep.subr.bf16.mxu0 0
    %2319 = vmatpush1.bf16.msra.mxu0 %v2277
    %2320 = vmatprep.subr.bf16.mxu0 0
    %2321 = vmatpush1.bf16.msra.mxu0 %v2278
    %2322 = vmatprep.subr.bf16.mxu0 0
    %2323 = vmatpush1.bf16.msra.mxu0 %v2279
    %2324 = vmatprep.subr.bf16.mxu0 0
    %2325 = vmatpush1.bf16.msra.mxu0 %v2280
    %2326 = vmatprep.subr.bf16.mxu0 0
    %2327 = vmatpush1.bf16.msra.mxu0 %v2281
    %2328 = vmatprep.subr.bf16.mxu0 0
    %2329 = vmatpush1.bf16.msra.mxu0 %v2282
    %2330 = vmatprep.subr.bf16.mxu0 0
    %2331 = vmatpush1.bf16.msra.mxu0 %v2283
    %2332 = vmatprep.mubr.bf16.mxu0 %v2164
    %2333 = vmatmul.mubr.bf16.gmra.mrb[0].mxu0 %v2163
    %v2334 = vpop.f32.mrb[0].mxu0
    %v2335 = vadd.f32 %v2202, %v2334
    %v2336 = vpop.f32.mrb[0].mxu0
    %v2337 = vpop.f32.mrb[0].mxu0
    %v2338 = vadd.f32 %v2202, %v2337
    %v2339 = vpop.f32.mrb[0].mxu0
    %2340 = vdwg.mxu0
    %v2341 = vmax.f32 %v2335, 0.0
    %v2342 = vmax.f32 %v2338, 0.0
    %v2343 = vpack.c.bf16 %v2342, %v2341
    %v2344 = vld [vmem:[%s7] sm:$0xf]
    %v2345 = vld [vmem:[%s7 + $0x4] sm:$0xf]
    %v2346 = vld [vmem:[%s7 + $0x8] sm:$0xf]
    %v2347 = vld [vmem:[%s7 + $0xc] sm:$0xf]
    %v2348 = vld [vmem:[%s7 + $0x10] sm:$0xf]
    %v2349 = vld [vmem:[%s7 + $0x14] sm:$0xf]
    %v2350 = vld [vmem:[%s7 + $0x18] sm:$0xf]
    %v2351 = vld [vmem:[%s7 + $0x1c] sm:$0xf]
    %v2352 = vld [vmem:[%s7 + $0x20] sm:$0xf]
    %v2353 = vld [vmem:[%s7 + $0x24] sm:$0xf]
    %v2354 = vld [vmem:[%s7 + $0x28] sm:$0xf]
    %v2355 = vld [vmem:[%s7 + $0x2c] sm:$0xf]
    %v2356 = vld [vmem:[%s7 + $0x30] sm:$0xf]
    %v2357 = vld [vmem:[%s7 + $0x34] sm:$0xf]
    %v2358 = vld [vmem:[%s7 + $0x38] sm:$0xf]
    %v2359 = vld [vmem:[%s7 + $0x3c] sm:$0xf]
    %v2360 = vld [vmem:[#allocation4] sm:$0x1]
    %v2362 = vlaneseq
    %v2363 = vshrl.u32 %v2362, 7
    %v2364 = vsub.s32 0, %v2363
    %v2365 = vrot.slane %v2360, %v2364
    %v2383 = vunpack.c.l.b16 %v2344
    %v2384 = vunpack.c.l.b16 %v2345
    %v2385 = vunpack.c.l.b16 %v2346
    %v2386 = vunpack.c.l.b16 %v2347
    %v2387 = vunpack.c.l.b16 %v2348
    %v2388 = vunpack.c.l.b16 %v2349
    %v2389 = vunpack.c.l.b16 %v2350
    %v2390 = vunpack.c.l.b16 %v2351
    %v2391 = vunpack.c.l.b16 %v2352
    %v2392 = vunpack.c.l.b16 %v2353
    %v2393 = vunpack.c.l.b16 %v2354
    %v2394 = vunpack.c.l.b16 %v2355
    %v2395 = vunpack.c.l.b16 %v2356
    %v2396 = vunpack.c.l.b16 %v2357
    %v2397 = vunpack.c.l.b16 %v2358
    %v2398 = vunpack.c.l.b16 %v2359
    %v2399 = vpack.c.b16 %v2384, %v2383
    %v2400 = vpack.c.b16 %v2386, %v2385
    %v2401 = vpack.c.b16 %v2388, %v2387
    %v2402 = vpack.c.b16 %v2390, %v2389
    %v2403 = vpack.c.b16 %v2392, %v2391
    %v2404 = vpack.c.b16 %v2394, %v2393
    %v2405 = vpack.c.b16 %v2396, %v2395
    %v2406 = vpack.c.b16 %v2398, %v2397
    %2415 = vmatprep.subr.bf16.mxu0 0
    %2416 = vmatpush1.bf16.msra.mxu0 %v2399
    %2417 = vmatprep.subr.bf16.mxu0 0
    %2418 = vmatpush1.bf16.msra.mxu0 %v2400
    %2419 = vmatprep.subr.bf16.mxu0 0
    %2420 = vmatpush1.bf16.msra.mxu0 %v2401
    %2421 = vmatprep.subr.bf16.mxu0 0
    %2422 = vmatpush1.bf16.msra.mxu0 %v2402
    %2423 = vmatprep.subr.bf16.mxu0 0
    %2424 = vmatpush1.bf16.msra.mxu0 %v2403
    %2425 = vmatprep.subr.bf16.mxu0 0
    %2426 = vmatpush1.bf16.msra.mxu0 %v2404
    %2427 = vmatprep.subr.bf16.mxu0 0
    %2428 = vmatpush1.bf16.msra.mxu0 %v2405
    %2429 = vmatprep.subr.bf16.mxu0 0
    %2430 = vmatpush1.bf16.msra.mxu0 %v2406
    %2431 = vmatprep.subr.bf16.mxu0 0
    %2432 = vmatpush1.bf16.msra.mxu0 0
    %2433 = vmatprep.subr.bf16.mxu0 0
    %2434 = vmatpush1.bf16.msra.mxu0 0
    %2435 = vmatprep.subr.bf16.mxu0 0
    %2436 = vmatpush1.bf16.msra.mxu0 0
    %2437 = vmatprep.subr.bf16.mxu0 0
    %2438 = vmatpush1.bf16.msra.mxu0 0
    %2439 = vmatprep.subr.bf16.mxu0 0
    %2440 = vmatpush1.bf16.msra.mxu0 0
    %2441 = vmatprep.subr.bf16.mxu0 0
    %2442 = vmatpush1.bf16.msra.mxu0 0
    %2443 = vmatprep.subr.bf16.mxu0 0
    %2444 = vmatpush1.bf16.msra.mxu0 0
    %2445 = vmatprep.subr.bf16.mxu0 0
    %2446 = vmatpush1.bf16.msra.mxu0 0
    %2447 = vmatprep.mubr.bf16.mxu0 0
    %2448 = vmatmul.mubr.bf16.gmra.mrb[0].mxu0 %v2343
    %v2449 = vpop.f32.mrb[0].mxu0
    %v2450 = vadd.f32 %v2365, %v2449
    %v2451 = vpop.f32.mrb[0].mxu0
    %v2452 = vpop.f32.mrb[0].mxu0
    %v2453 = vadd.f32 %v2365, %v2452
    %v2454 = vpop.f32.mrb[0].mxu0
    %2455 = vdwg.mxu0
    %v2456 = vmax.f32 %v2450, 0.0
    %v2457 = vmax.f32 %v2453, 0.0
    %v2458 = vpack.c.bf16 %v2457, %v2456
    %v2459 = vld [vmem:[%s9] sm:$0xf]
    %v2460 = vld [vmem:[%s9 + $0x4] sm:$0xf]
    %v2461 = vld [vmem:[%s9 + $0x8] sm:$0xf]
    %v2462 = vld [vmem:[%s9 + $0xc] sm:$0xf]
    %v2463 = vld [vmem:[%s9 + $0x10] sm:$0xf]
    %v2464 = vld [vmem:[%s9 + $0x14] sm:$0xf]
    %v2465 = vld [vmem:[%s9 + $0x18] sm:$0xf]
    %v2466 = vld [vmem:[%s9 + $0x1c] sm:$0xf]
    %v2467 = vld [vmem:[#allocation6] sm:$0x1]
    %v2469 = vlaneseq
    %v2470 = vshrl.u32 %v2469, 7
    %v2471 = vsub.s32 0, %v2470
    %v2472 = vrot.slane %v2467, %v2471
    %v2482 = vunpack.c.l.b16 %v2459
    %v2483 = vunpack.c.l.b16 %v2460
    %v2484 = vunpack.c.l.b16 %v2461
    %v2485 = vunpack.c.l.b16 %v2462
    %v2486 = vunpack.c.l.b16 %v2463
    %v2487 = vunpack.c.l.b16 %v2464
    %v2488 = vunpack.c.l.b16 %v2465
    %v2489 = vunpack.c.l.b16 %v2466
    %v2490 = vpack.c.b16 %v2483, %v2482
    %v2491 = vpack.c.b16 %v2485, %v2484
    %v2492 = vpack.c.b16 %v2487, %v2486
    %v2493 = vpack.c.b16 %v2489, %v2488
    %vm2498 = vcmask 523264
    %v2500 = vsel %vm2498, %v2458, 0
    %2502 = vmatprep.subr.bf16.mxu0 0
    %2503 = vmatpush1.bf16.msra.mxu0 %v2490
    %2504 = vmatprep.subr.bf16.mxu0 0
    %2505 = vmatpush1.bf16.msra.mxu0 %v2491
    %2506 = vmatprep.subr.bf16.mxu0 0
    %2507 = vmatpush1.bf16.msra.mxu0 %v2492
    %2508 = vmatprep.subr.bf16.mxu0 0
    %2509 = vmatpush1.bf16.msra.mxu0 %v2493
    %2510 = vmatprep.subr.bf16.mxu0 0
    %2511 = vmatpush1.bf16.msra.mxu0 0
    %2512 = vmatprep.subr.bf16.mxu0 0
    %2513 = vmatpush1.bf16.msra.mxu0 0
    %2514 = vmatprep.subr.bf16.mxu0 0
    %2515 = vmatpush1.bf16.msra.mxu0 0
    %2516 = vmatprep.subr.bf16.mxu0 0
    %2517 = vmatpush1.bf16.msra.mxu0 0
    %2518 = vmatprep.subr.bf16.mxu0 0
    %2519 = vmatpush1.bf16.msra.mxu0 0
    %2520 = vmatprep.subr.bf16.mxu0 0
    %2521 = vmatpush1.bf16.msra.mxu0 0
    %2522 = vmatprep.subr.bf16.mxu0 0
    %2523 = vmatpush1.bf16.msra.mxu0 0
    %2524 = vmatprep.subr.bf16.mxu0 0
    %2525 = vmatpush1.bf16.msra.mxu0 0
    %2526 = vmatprep.subr.bf16.mxu0 0
    %2527 = vmatpush1.bf16.msra.mxu0 0
    %2528 = vmatprep.subr.bf16.mxu0 0
    %2529 = vmatpush1.bf16.msra.mxu0 0
    %2530 = vmatprep.subr.bf16.mxu0 0
    %2531 = vmatpush1.bf16.msra.mxu0 0
    %2532 = vmatprep.subr.bf16.mxu0 0
    %2533 = vmatpush1.bf16.msra.mxu0 0
    %2534 = vmatprep.mubr.bf16.mxu0 0
    %2535 = vmatmul.mubr.bf16.gmra.mrb[0].mxu0 %v2500
    %v2536 = vpop.f32.mrb[0].mxu0
    %v2537 = vadd.f32 %v2472, %v2536
    %v2538 = vpop.f32.mrb[0].mxu0
    %v2539 = vpop.f32.mrb[0].mxu0
    %v2540 = vadd.f32 %v2472, %v2539
    %v2541 = vpop.f32.mrb[0].mxu0
    %2542 = vdwg.mxu0
    %2543 = vst [vmem:[%s11] sm:$0xff] %v2537
    %2544 = vst [vmem:[%s11 + $0x8] sm:$0xff] %v2540
    // Predicated region
    $region58: #{model_forward.1} parent=1 // pred_check
      _
    $region59: #{model_forward.1} parent=1 // pred_check_branch
      %2546 = sbr.rel (0) target = $region61
    $region60: #{model_forward.1} parent=1 // pred_region
      _
    $region61: #{model_forward.1} parent=1 // pred_fallthru
      _
    // Predicated region
    $region62: #{model_forward.1} parent=1 // pred_check
      _
    $region63: #{model_forward.1} parent=1 // pred_check_branch
      %2548 = sbr.rel (0) target = $region65
    $region64: #{model_forward.1} parent=1 // pred_region
      _
    $region65: #{model_forward.1} parent=1 // pred_fallthru
      _
    %2549 = vsyncpa [#allocation3], 1
    %2550 = vsyncpa [#allocation5], 1

</llo_original>
